<compile_context>
chip_gen: v7x
topology: tpu7x:2x2x1
jax: 0.10.0
libtpu: 0.0.40
codegen_flags: <defaults>
</compile_context>

<pallas_src>
import functools

import jax
import jax.numpy as jnp
from jax.experimental import pallas as pl
from jax.experimental.pallas import tpu as pltpu


def _round_up(x: int, m: int) -> int:
    return ((x + m - 1) // m) * m


def _triplet_ce_kernel(emb_ref, lab_ref, sqrow_ref, rhs_ref, collab_ref,
                       colsq_ref, colcls_ref, colbias_ref, out_ref,
                       ap2_ref, an2_ref, m_ref, l_ref, pick_ref, *, margin: float):
    j = pl.program_id(1)
    f32 = jnp.float32

    # ---- per-row-tile accumulator init (first column block) ----
    @pl.when(j == 0)
    def _():
        ap2_ref[...] = jnp.full(ap2_ref.shape, -jnp.inf, ap2_ref.dtype)
        an2_ref[...] = jnp.full(an2_ref.shape, jnp.inf, an2_ref.dtype)
        m_ref[...] = jnp.full(m_ref.shape, -1e30, m_ref.dtype)   # finite "-inf"
        l_ref[...] = jnp.zeros(l_ref.shape, l_ref.dtype)
        pick_ref[...] = jnp.zeros(pick_ref.shape, pick_ref.dtype)

    lab = lab_ref[...]            # (tb, 1) i32, -2 on padded rows
    sq_row = sqrow_ref[...]       # (tb, 1) f32, |x_i|^2 (0 on padded rows)
    col_lab = collab_ref[...]     # (1, tc) i32, label on gram cols, -1 elsewhere
    col_sq = colsq_ref[...]       # (1, tc) f32, |x_j|^2 on gram cols, 0 elsewhere
    col_cls = colcls_ref[...]     # (1, tc) i32, class id on logit cols, -1 elsewhere
    col_bias = colbias_ref[...]   # (1, tc) f32, bias on logit cols, 0 elsewhere

    # ---- single MXU call per (row tile, column block): [gram | raw logits] ----
    if emb_ref.dtype == jnp.float32:
        mm = jnp.dot(emb_ref[...], rhs_ref[...],
                     preferred_element_type=jnp.float32,
                     precision=jax.lax.Precision.HIGHEST)
    else:  # bf16 MXU inputs (default fast path), f32 accumulation
        mm = jnp.dot(emb_ref[...], rhs_ref[...],
                     preferred_element_type=jnp.float32)

    # ---- hard positive / negative mining on SQUARED distances (running) ----
    d2 = sq_row + col_sq - 2.0 * mm                          # (tb, tc)
    same = col_lab == lab                                    # only true on gram cols
    neg = jnp.logical_and(col_lab >= 0, jnp.logical_not(same))
    ap2_ref[...] = jnp.maximum(
        ap2_ref[...],
        jnp.max(jnp.where(same, d2, -jnp.inf), axis=1, keepdims=True))
    an2_ref[...] = jnp.minimum(
        an2_ref[...],
        jnp.min(jnp.where(neg, d2, jnp.inf), axis=1, keepdims=True))

    # ---- online logsumexp over the classifier columns of this block ----
    logits = mm + col_bias
    masked = jnp.where(col_cls >= 0, logits, -jnp.inf)
    m_new = jnp.maximum(m_ref[...], jnp.max(masked, axis=1, keepdims=True))
    l_ref[...] = (l_ref[...] * jnp.exp(m_ref[...] - m_new)
                  + jnp.sum(jnp.exp(masked - m_new), axis=1, keepdims=True))
    m_ref[...] = m_new
    pick_ref[...] += jnp.sum(jnp.where(col_cls == lab, logits, f32(0.0)),
                             axis=1, keepdims=True)

    # ---- finalize on the last column block ----
    @pl.when(j == pl.num_programs(1) - 1)
    def _():
        # sqrt(clamp(., 1e-12)) is monotone -> applying it after max/min is exact.
        ap = jnp.sqrt(jnp.maximum(ap2_ref[...], f32(1e-12)))
        an = jnp.sqrt(jnp.maximum(an2_ref[...], f32(1e-12)))
        trip = jnp.maximum(ap - an + f32(margin), f32(0.0))   # MarginRankingLoss term
        lse = m_ref[...] + jnp.log(l_ref[...])
        ce = lse - pick_ref[...]
        valid = lab >= 0                                       # padded rows carry -2
        out_ref[...] = jnp.reshape(
            jnp.sum(jnp.where(valid, trip + ce, f32(0.0))), (1, 1, 1))


def triplet_loss_forward(embeddings, labels, weight, bias, margin: float, *,
                         tile_rows: int | None = None,
                         tile_cols: int | None = None,
                         mxu_dtype=jnp.bfloat16):
    """Training-mode forward of TripletLoss: triplet_hard + cross_entropy (mean)."""
    B, D = embeddings.shape
    C = weight.shape[0]

    Dp = _round_up(D, 128)        # lane-dense feature dim
    Cp = _round_up(C, 128)        # lane-dense class dim
    Bc = _round_up(B, 128)        # lane-dense gram-column dim

    # --- generation-aware VMEM budget (v7x has 64 MiB per TC, v5e/v6e 128 MiB) ---
    try:
        vmem_cap = int(pltpu.get_tpu_info().vmem_capacity_bytes)
    except Exception:
        vmem_cap = 64 * 1024 * 1024           # conservative fallback, safe everywhere
    vmem_budget = min(int(0.75 * vmem_cap), 100 * 1024 * 1024)

    # --- row tiling (bigger tiles on 128 MiB parts; megacore balance) ---
    if tile_rows is None:
        default_tr = 512 if vmem_cap > (64 << 20) else 256
        tile_rows = min(_round_up(B, 8), default_tr)
        if _round_up(B, tile_rows) // tile_rows < 2 and B >= 16:
            tile_rows = _round_up((B + 1) // 2, 8)   # give both TCs work on v7x
    tile_rows = max(8, _round_up(tile_rows, 8))
    Br = _round_up(B, tile_rows)
    num_row_tiles = Br // tile_rows

    # --- column tiling over the fused RHS [emb_all^T | W^T] ---
    Wraw = Bc + Cp
    if tile_cols is None:
        tile_cols = Wraw if Wraw <= 1024 else 1024
    tile_cols = _round_up(tile_cols, 128)
    Wtot = _round_up(Wraw, tile_cols)
    num_col_steps = Wtot // tile_cols

    # --- host-side operand construction (f32 math for the scalars) ---
    emb32 = embeddings.astype(jnp.float32)
    emb_rows = jnp.zeros((Br, Dp), jnp.float32).at[:B, :D].set(emb32)
    sq_row = jnp.sum(emb_rows * emb_rows, axis=1, keepdims=True)   # (Br, 1), hoisted
    emb_rows_mxu = emb_rows.astype(mxu_dtype)

    emb_cols = jnp.zeros((Bc, Dp), jnp.float32).at[:B, :D].set(emb32)
    sq_col = jnp.sum(emb_cols * emb_cols, axis=1)                  # (Bc,)
    w_pad = jnp.zeros((Cp, Dp), jnp.float32).at[:C, :D].set(weight.astype(jnp.float32))

    # Fused, pre-transposed RHS in the MXU dtype (halves HBM + VMEM for bf16).
    # TODO(synk): for very large B, fuse this construction into the pallas operand
    # (allow_input_fusion) to avoid the extra HBM round trip of emb^T.
    rhs = jnp.zeros((Dp, Wtot), mxu_dtype)
    rhs = rhs.at[:, :Bc].set(emb_cols.T.astype(mxu_dtype))
    rhs = rhs.at[:, Bc:Bc + Cp].set(w_pad.T.astype(mxu_dtype))

    lab = labels.astype(jnp.int32)
    lab_col = jnp.full((Br, 1), -2, jnp.int32).at[:B, 0].set(lab)

    # Per-column metadata for the unified [gram | logits] column space.
    col_label = jnp.full((Wtot,), -1, jnp.int32).at[:B].set(lab).reshape(1, Wtot)
    col_sq = jnp.zeros((Wtot,), jnp.float32).at[:Bc].set(sq_col).reshape(1, Wtot)
    col_class = (jnp.full((Wtot,), -1, jnp.int32)
                 .at[Bc:Bc + C].set(jnp.arange(C, dtype=jnp.int32)).reshape(1, Wtot))
    col_bias = (jnp.zeros((Wtot,), jnp.float32)
                .at[Bc:Bc + C].set(bias.astype(jnp.float32)).reshape(1, Wtot))

    # --- VMEM sizing (clamped to the generation-aware budget) ---
    isz = jnp.dtype(mxu_dtype).itemsize
    est = (2 * tile_rows * Dp * isz            # emb tile (double buffered)
           + 2 * Dp * tile_cols * isz          # rhs column block
           + 2 * tile_cols * 16                # column metadata
           + 2 * tile_rows * 8                 # labels + |x_i|^2
           + 5 * tile_rows * 4                 # running-state scratch
           + 8 * tile_rows * tile_cols * 4)    # mm/d2/mask/exp temporaries
    vmem_limit = int(min(max(2 * est, 32 * 1024 * 1024), vmem_budget))

    cost = pl.CostEstimate(
        flops=2 * Br * Dp * Wtot + 10 * Br * Wtot,
        transcendentals=Br * Wtot + 4 * Br,
        bytes_accessed=(Br * Dp * isz + num_row_tiles * Dp * Wtot * isz
                        + Wtot * 16 + Br * 8 + num_row_tiles * 4))

    # Grid-invariant (single column block) operands don't need a second pipeline
    # buffer; when column-tiled they do (DMA/compute overlap on the RHS stream).
    single_col = num_col_steps == 1

    def col_spec(shape, imap):
        if single_col:
            return pl.BlockSpec(shape, imap, pipeline_mode=pl.Buffered(1))
        return pl.BlockSpec(shape, imap)

    in_specs = [
        pl.BlockSpec((tile_rows, Dp), lambda i, j: (i, 0)),     # emb row tile (MXU dtype)
        pl.BlockSpec((tile_rows, 1), lambda i, j: (i, 0)),      # labels
        pl.BlockSpec((tile_rows, 1), lambda i, j: (i, 0)),      # |x_i|^2
        col_spec((Dp, tile_cols), lambda i, j: (0, j)),         # fused [emb^T | W^T]
        col_spec((1, tile_cols), lambda i, j: (0, j)),          # column labels
        col_spec((1, tile_cols), lambda i, j: (0, j)),          # column |x_j|^2
        col_spec((1, tile_cols), lambda i, j: (0, j)),          # column class ids
        col_spec((1, tile_cols), lambda i, j: (0, j)),          # column bias
    ]

    kern = functools.partial(_triplet_ce_kernel, margin=float(margin))
    partials = pl.pallas_call(
        kern,
        out_shape=jax.ShapeDtypeStruct((num_row_tiles, 1, 1), jnp.float32),
        grid=(num_row_tiles, num_col_steps),
        in_specs=in_specs,
        out_specs=pl.BlockSpec((1, 1, 1), lambda i, j: (i, 0, 0)),
        scratch_shapes=[pltpu.VMEM((tile_rows, 1), jnp.float32)] * 5,
        compiler_params=pltpu.CompilerParams(
            dimension_semantics=("parallel", "arbitrary"),
            vmem_limit_bytes=vmem_limit),
        cost_estimate=cost,
    )(emb_rows_mxu, lab_col, sq_row, rhs, col_label, col_sq, col_class, col_bias)

    return jnp.sum(partials) / jnp.float32(B)


def _reference(embeddings, labels, weight, bias, margin):
    """Pure-JAX reference mirroring the PyTorch module (training mode)."""
    hi = jax.lax.Precision.HIGHEST
    sq = jnp.sum(embeddings ** 2, axis=1, keepdims=True)
    gram = jnp.dot(embeddings, embeddings.T, precision=hi)
    d2 = sq + sq.T - 2.0 * gram
    dist = jnp.sqrt(jnp.clip(d2, 1e-12))
    same = labels[:, None] == labels[None, :]
    ap = jnp.max(jnp.where(same, dist, -jnp.inf), axis=1)
    an = jnp.min(jnp.where(same, jnp.inf, dist), axis=1)
    triplet = jnp.mean(jnp.maximum(ap - an + margin, 0.0))
    logits = jnp.dot(embeddings, weight.T, precision=hi) + bias
    lse = jax.scipy.special.logsumexp(logits, axis=1)
    picked = jnp.take_along_axis(logits, labels[:, None], axis=1)[:, 0]
    ce = jnp.mean(lse - picked)
    return triplet + ce


if __name__ == "__main__":
    # Small shapes: batch=8, in_features=32, num_classes=4, margin=0.3
    B, D, C = 8, 32, 4
    margin = 0.3

    key = jax.random.PRNGKey(0)
    k_emb, k_w, k_b = jax.random.split(key, 3)
    embeddings = jax.random.normal(k_emb, (B, D), dtype=jnp.float32)
    # labels chosen so every sample has >=1 positive and >=1 negative
    labels = jnp.array([0, 0, 1, 1, 2, 2, 3, 3], dtype=jnp.int32)

    # Deterministic nn.Linear-style init: uniform(-1/sqrt(D), 1/sqrt(D))
    bound = 1.0 / (D ** 0.5)
    weight = jax.random.uniform(k_w, (C, D), jnp.float32, -bound, bound)
    bias = jax.random.uniform(k_b, (C,), jnp.float32, -bound, bound)

    ref = _reference(embeddings, labels, weight, bias, margin)

    # Exact-semantics check with f32 MXU inputs.
    loss_f32 = jax.block_until_ready(
        triplet_loss_forward(embeddings, labels, weight, bias, margin,
                             mxu_dtype=jnp.float32))
    assert jnp.allclose(loss_f32, ref, rtol=1e-3, atol=1e-3), (loss_f32, ref)

    # Default fast path: bf16 MXU inputs (f32 accumulation and reductions).
    loss_bf16 = jax.block_until_ready(
        triplet_loss_forward(embeddings, labels, weight, bias, margin))
    assert jnp.allclose(loss_bf16, ref, rtol=1e-1, atol=1e-1), (loss_bf16, ref)

    print("KERNEL_OK")
</pallas_src>

<mosaic_0001>
module attributes {stable_mosaic.version = 11 : i64} {
  func.func @_triplet_ce_kernel(%arg0: i32, %arg1: i32, %arg2: memref<8x128xf32, #tpu.memory_space<vmem>>, %arg3: memref<8x1xi32, #tpu.memory_space<vmem>>, %arg4: memref<8x1xf32, #tpu.memory_space<vmem>>, %arg5: memref<128x256xf32, #tpu.memory_space<vmem>>, %arg6: memref<1x256xi32, #tpu.memory_space<vmem>>, %arg7: memref<1x256xf32, #tpu.memory_space<vmem>>, %arg8: memref<1x256xi32, #tpu.memory_space<vmem>>, %arg9: memref<1x256xf32, #tpu.memory_space<vmem>>, %arg10: memref<1x1x1xf32, #tpu.memory_space<vmem>>, %arg11: memref<8x1xf32, #tpu.memory_space<vmem>>, %arg12: memref<8x1xf32, #tpu.memory_space<vmem>>, %arg13: memref<8x1xf32, #tpu.memory_space<vmem>>, %arg14: memref<8x1xf32, #tpu.memory_space<vmem>>, %arg15: memref<8x1xf32, #tpu.memory_space<vmem>>) attributes {dimension_semantics = [#tpu.dimension_semantics<parallel>, #tpu.dimension_semantics<arbitrary>], iteration_bounds = array<i64: 1, 1>, scalar_prefetch = 0 : i64, scratch_operands = 5 : i64, tpu.core_type = #tpu.core_type<tc>, window_params = [{transform_indices = @transform_0, window_bounds = array<i64: 8, 128>}, {transform_indices = @transform_1, window_bounds = array<i64: 8, 1>}, {transform_indices = @transform_2, window_bounds = array<i64: 8, 1>}, {pipeline_mode = #tpu.pipeline_mode<synchronous>, transform_indices = @transform_3, window_bounds = array<i64: 128, 256>}, {pipeline_mode = #tpu.pipeline_mode<synchronous>, transform_indices = @transform_4, window_bounds = array<i64: 1, 256>}, {pipeline_mode = #tpu.pipeline_mode<synchronous>, transform_indices = @transform_5, window_bounds = array<i64: 1, 256>}, {pipeline_mode = #tpu.pipeline_mode<synchronous>, transform_indices = @transform_6, window_bounds = array<i64: 1, 256>}, {pipeline_mode = #tpu.pipeline_mode<synchronous>, transform_indices = @transform_7, window_bounds = array<i64: 1, 256>}, {transform_indices = @transform_8, window_bounds = array<i64: 1, 1, 1>}]} {
    %c0_i32 = arith.constant 0 : i32
    %0 = arith.cmpi eq, %arg1, %c0_i32 : i32
    %1 = arith.extui %0 : i1 to i32
    %c0_i32_0 = arith.constant 0 : i32
    %2 = arith.cmpi ne, %1, %c0_i32_0 : i32
    scf.if %2 {
      %cst_53 = arith.constant 0xFF800000 : f32
      %78 = vector.broadcast %cst_53 : f32 to vector<8x1xf32>
      %c0_54 = arith.constant 0 : index
      %c0_55 = arith.constant 0 : index
      %79 = vector.load %arg11[%c0_54, %c0_55] : memref<8x1xf32, #tpu.memory_space<vmem>>, vector<8x1xf32>
      tpu.vector_store %arg11[%c0_54, %c0_55], %78 {strides = array<i32>} : memref<8x1xf32, #tpu.memory_space<vmem>>, vector<8x1xf32>,
      %cst_56 = arith.constant 0x7F800000 : f32
      %80 = vector.broadcast %cst_56 : f32 to vector<8x1xf32>
      %c0_57 = arith.constant 0 : index
      %c0_58 = arith.constant 0 : index
      %81 = vector.load %arg12[%c0_57, %c0_58] : memref<8x1xf32, #tpu.memory_space<vmem>>, vector<8x1xf32>
      tpu.vector_store %arg12[%c0_57, %c0_58], %80 {strides = array<i32>} : memref<8x1xf32, #tpu.memory_space<vmem>>, vector<8x1xf32>,
      %cst_59 = arith.constant -1.000000e+30 : f32
      %82 = vector.broadcast %cst_59 : f32 to vector<8x1xf32>
      %c0_60 = arith.constant 0 : index
      %c0_61 = arith.constant 0 : index
      %83 = vector.load %arg13[%c0_60, %c0_61] : memref<8x1xf32, #tpu.memory_space<vmem>>, vector<8x1xf32>
      tpu.vector_store %arg13[%c0_60, %c0_61], %82 {strides = array<i32>} : memref<8x1xf32, #tpu.memory_space<vmem>>, vector<8x1xf32>,
      %cst_62 = arith.constant 0.000000e+00 : f32
      %84 = vector.broadcast %cst_62 : f32 to vector<8x1xf32>
      %c0_63 = arith.constant 0 : index
      %c0_64 = arith.constant 0 : index
      %85 = vector.load %arg14[%c0_63, %c0_64] : memref<8x1xf32, #tpu.memory_space<vmem>>, vector<8x1xf32>
      tpu.vector_store %arg14[%c0_63, %c0_64], %84 {strides = array<i32>} : memref<8x1xf32, #tpu.memory_space<vmem>>, vector<8x1xf32>,
      %cst_65 = arith.constant 0.000000e+00 : f32
      %86 = vector.broadcast %cst_65 : f32 to vector<8x1xf32>
      %c0_66 = arith.constant 0 : index
      %c0_67 = arith.constant 0 : index
      %87 = vector.load %arg15[%c0_66, %c0_67] : memref<8x1xf32, #tpu.memory_space<vmem>>, vector<8x1xf32>
      tpu.vector_store %arg15[%c0_66, %c0_67], %86 {strides = array<i32>} : memref<8x1xf32, #tpu.memory_space<vmem>>, vector<8x1xf32>,
    } else {
    }
    %c0 = arith.constant 0 : index
    %c0_1 = arith.constant 0 : index
    %3 = vector.load %arg3[%c0, %c0_1] : memref<8x1xi32, #tpu.memory_space<vmem>>, vector<8x1xi32>
    %c0_2 = arith.constant 0 : index
    %c0_3 = arith.constant 0 : index
    %4 = vector.load %arg4[%c0_2, %c0_3] : memref<8x1xf32, #tpu.memory_space<vmem>>, vector<8x1xf32>
    %c0_4 = arith.constant 0 : index
    %c0_5 = arith.constant 0 : index
    %5 = vector.load %arg6[%c0_4, %c0_5] : memref<1x256xi32, #tpu.memory_space<vmem>>, vector<1x256xi32>
    %c0_6 = arith.constant 0 : index
    %c0_7 = arith.constant 0 : index
    %6 = vector.load %arg7[%c0_6, %c0_7] : memref<1x256xf32, #tpu.memory_space<vmem>>, vector<1x256xf32>
    %c0_8 = arith.constant 0 : index
    %c0_9 = arith.constant 0 : index
    %7 = vector.load %arg8[%c0_8, %c0_9] : memref<1x256xi32, #tpu.memory_space<vmem>>, vector<1x256xi32>
    %c0_10 = arith.constant 0 : index
    %c0_11 = arith.constant 0 : index
    %8 = vector.load %arg9[%c0_10, %c0_11] : memref<1x256xf32, #tpu.memory_space<vmem>>, vector<1x256xf32>
    %c0_12 = arith.constant 0 : index
    %c0_13 = arith.constant 0 : index
    %9 = vector.load %arg2[%c0_12, %c0_13] : memref<8x128xf32, #tpu.memory_space<vmem>>, vector<8x128xf32>
    %c0_14 = arith.constant 0 : index
    %c0_15 = arith.constant 0 : index
    %10 = vector.load %arg5[%c0_14, %c0_15] : memref<128x256xf32, #tpu.memory_space<vmem>>, vector<128x256xf32>
    %cst = arith.constant dense<0.000000e+00> : vector<8x256xf32>
    %11 = tpu.matmul %9, %10, %cst {dimension_numbers = #tpu.dot_dimension_numbers<[1], [0], [0], [1], [0, 0, 1, 1], [], []>, precision = #tpu.contract_precision<fp32>} : vector<8x128xf32>, vector<128x256xf32>, vector<8x256xf32> -> vector<8x256xf32>
    %12 = vector.broadcast %4 : vector<8x1xf32> to vector<8x256xf32>
    %13 = vector.broadcast %6 : vector<1x256xf32> to vector<8x256xf32>
    %14 = arith.addf %12, %13 : vector<8x256xf32>
    %cst_16 = arith.constant 2.000000e+00 : f32
    %15 = vector.broadcast %cst_16 : f32 to vector<8x256xf32>
    %16 = arith.mulf %15, %11 : vector<8x256xf32>
    %17 = arith.subf %14, %16 : vector<8x256xf32>
    %18 = vector.broadcast %5 : vector<1x256xi32> to vector<8x256xi32>
    %19 = vector.broadcast %3 : vector<8x1xi32> to vector<8x256xi32>
    %20 = arith.cmpi eq, %18, %19 : vector<8x256xi32>
    %c0_i32_17 = arith.constant 0 : i32
    %21 = vector.broadcast %c0_i32_17 : i32 to vector<1x256xi32>
    %22 = arith.cmpi sge, %5, %21 : vector<1x256xi32>
    %cst_18 = arith.constant dense<true> : vector<8x256xi1>
    %23 = arith.xori %20, %cst_18 : vector<8x256xi1>
    %24 = vector.broadcast %22 : vector<1x256xi1> to vector<8x256xi1>
    %25 = arith.andi %24, %23 : vector<8x256xi1>
    %c0_19 = arith.constant 0 : index
    %c0_20 = arith.constant 0 : index
    %26 = vector.load %arg11[%c0_19, %c0_20] : memref<8x1xf32, #tpu.memory_space<vmem>>, vector<8x1xf32>
    %cst_21 = arith.constant 0xFF800000 : f32
    %27 = vector.broadcast %cst_21 : f32 to vector<8x256xf32>
    %28 = arith.select %20, %17, %27 : vector<8x256xi1>, vector<8x256xf32>
    %cst_22 = arith.constant dense<0xFF800000> : vector<8xf32>
    %29 = vector.multi_reduction <maximumf>, %28, %cst_22 [1] : vector<8x256xf32> to vector<8xf32>
    %30 = vector.shape_cast %29 : vector<8xf32> to vector<8x1xf32>
    %31 = arith.maximumf %26, %30 : vector<8x1xf32>
    %c0_23 = arith.constant 0 : index
    %c0_24 = arith.constant 0 : index
    %32 = vector.load %arg11[%c0_23, %c0_24] : memref<8x1xf32, #tpu.memory_space<vmem>>, vector<8x1xf32>
    tpu.vector_store %arg11[%c0_23, %c0_24], %31 {strides = array<i32>} : memref<8x1xf32, #tpu.memory_space<vmem>>, vector<8x1xf32>,
    %c0_25 = arith.constant 0 : index
    %c0_26 = arith.constant 0 : index
    %33 = vector.load %arg12[%c0_25, %c0_26] : memref<8x1xf32, #tpu.memory_space<vmem>>, vector<8x1xf32>
    %cst_27 = arith.constant 0x7F800000 : f32
    %34 = vector.broadcast %cst_27 : f32 to vector<8x256xf32>
    %35 = arith.select %25, %17, %34 : vector<8x256xi1>, vector<8x256xf32>
    %cst_28 = arith.constant dense<0x7F800000> : vector<8xf32>
    %36 = vector.multi_reduction <minimumf>, %35, %cst_28 [1] : vector<8x256xf32> to vector<8xf32>
    %37 = vector.shape_cast %36 : vector<8xf32> to vector<8x1xf32>
    %38 = arith.minimumf %33, %37 : vector<8x1xf32>
    %c0_29 = arith.constant 0 : index
    %c0_30 = arith.constant 0 : index
    %39 = vector.load %arg12[%c0_29, %c0_30] : memref<8x1xf32, #tpu.memory_space<vmem>>, vector<8x1xf32>
    tpu.vector_store %arg12[%c0_29, %c0_30], %38 {strides = array<i32>} : memref<8x1xf32, #tpu.memory_space<vmem>>, vector<8x1xf32>,
    %40 = vector.broadcast %8 : vector<1x256xf32> to vector<8x256xf32>
    %41 = arith.addf %11, %40 : vector<8x256xf32>
    %c0_i32_31 = arith.constant 0 : i32
    %42 = vector.broadcast %c0_i32_31 : i32 to vector<1x256xi32>
    %43 = arith.cmpi sge, %7, %42 : vector<1x256xi32>
    %cst_32 = arith.constant 0xFF800000 : f32
    %44 = vector.shape_cast %43 : vector<1x256xi1> to vector<1x256xi1>
    %45 = vector.broadcast %44 : vector<1x256xi1> to vector<8x256xi1>
    %46 = vector.broadcast %cst_32 : f32 to vector<8x256xf32>
    %47 = arith.select %45, %41, %46 : vector<8x256xi1>, vector<8x256xf32>
    %c0_33 = arith.constant 0 : index
    %c0_34 = arith.constant 0 : index
    %48 = vector.load %arg13[%c0_33, %c0_34] : memref<8x1xf32, #tpu.memory_space<vmem>>, vector<8x1xf32>
    %cst_35 = arith.constant dense<0xFF800000> : vector<8xf32>
    %49 = vector.multi_reduction <maximumf>, %47, %cst_35 [1] : vector<8x256xf32> to vector<8xf32>
    %50 = vector.shape_cast %49 : vector<8xf32> to vector<8x1xf32>
    %51 = arith.maximumf %48, %50 : vector<8x1xf32>
    %c0_36 = arith.constant 0 : index
    %c0_37 = arith.constant 0 : index
    %52 = vector.load %arg14[%c0_36, %c0_37] : memref<8x1xf32, #tpu.memory_space<vmem>>, vector<8x1xf32>
    %c0_38 = arith.constant 0 : index
    %c0_39 = arith.constant 0 : index
    %53 = vector.load %arg13[%c0_38, %c0_39] : memref<8x1xf32, #tpu.memory_space<vmem>>, vector<8x1xf32>
    %54 = arith.subf %53, %51 : vector<8x1xf32>
    %55 = math.exp %54 : vector<8x1xf32>
    %56 = arith.mulf %52, %55 : vector<8x1xf32>
    %57 = vector.broadcast %51 : vector<8x1xf32> to vector<8x256xf32>
    %58 = arith.subf %47, %57 : vector<8x256xf32>
    %59 = math.exp %58 : vector<8x256xf32>
    %cst_40 = arith.constant dense<0.000000e+00> : vector<8xf32>
    %60 = vector.multi_reduction <add>, %59, %cst_40 [1] : vector<8x256xf32> to vector<8xf32>
    %61 = vector.shape_cast %60 : vector<8xf32> to vector<8x1xf32>
    %62 = arith.addf %56, %61 : vector<8x1xf32>
    %c0_41 = arith.constant 0 : index
    %c0_42 = arith.constant 0 : index
    %63 = vector.load %arg14[%c0_41, %c0_42] : memref<8x1xf32, #tpu.memory_space<vmem>>, vector<8x1xf32>
    tpu.vector_store %arg14[%c0_41, %c0_42], %62 {strides = array<i32>} : memref<8x1xf32, #tpu.memory_space<vmem>>, vector<8x1xf32>,
    %c0_43 = arith.constant 0 : index
    %c0_44 = arith.constant 0 : index
    %64 = vector.load %arg13[%c0_43, %c0_44] : memref<8x1xf32, #tpu.memory_space<vmem>>, vector<8x1xf32>
    tpu.vector_store %arg13[%c0_43, %c0_44], %51 {strides = array<i32>} : memref<8x1xf32, #tpu.memory_space<vmem>>, vector<8x1xf32>,
    %c0_45 = arith.constant 0 : index
    %c0_46 = arith.constant 0 : index
    %65 = vector.load %arg15[%c0_45, %c0_46] : memref<8x1xf32, #tpu.memory_space<vmem>>, vector<8x1xf32>
    %66 = vector.broadcast %7 : vector<1x256xi32> to vector<8x256xi32>
    %67 = vector.broadcast %3 : vector<8x1xi32> to vector<8x256xi32>
    %68 = arith.cmpi eq, %66, %67 : vector<8x256xi32>
    %cst_47 = arith.constant 0.000000e+00 : f32
    %69 = vector.broadcast %cst_47 : f32 to vector<8x256xf32>
    %70 = arith.select %68, %41, %69 : vector<8x256xi1>, vector<8x256xf32>
    %cst_48 = arith.constant dense<0.000000e+00> : vector<8xf32>
    %71 = vector.multi_reduction <add>, %70, %cst_48 [1] : vector<8x256xf32> to vector<8xf32>
    %72 = vector.shape_cast %71 : vector<8xf32> to vector<8x1xf32>
    %73 = arith.addf %65, %72 : vector<8x1xf32>
    %c0_49 = arith.constant 0 : index
    %c0_50 = arith.constant 0 : index
    %74 = vector.load %arg15[%c0_49, %c0_50] : memref<8x1xf32, #tpu.memory_space<vmem>>, vector<8x1xf32>
    tpu.vector_store %arg15[%c0_49, %c0_50], %73 {strides = array<i32>} : memref<8x1xf32, #tpu.memory_space<vmem>>, vector<8x1xf32>,
    %c0_i32_51 = arith.constant 0 : i32
    %75 = arith.cmpi eq, %arg1, %c0_i32_51 : i32
    %76 = arith.extui %75 : i1 to i32
    %c0_i32_52 = arith.constant 0 : i32
    %77 = arith.cmpi ne, %76, %c0_i32_52 : i32
    scf.if %77 {
      %c0_53 = arith.constant 0 : index
      %c0_54 = arith.constant 0 : index
      %78 = vector.load %arg11[%c0_53, %c0_54] : memref<8x1xf32, #tpu.memory_space<vmem>>, vector<8x1xf32>
      %cst_55 = arith.constant 9.99999996E-13 : f32
      %79 = vector.broadcast %cst_55 : f32 to vector<8x1xf32>
      %80 = arith.maximumf %78, %79 : vector<8x1xf32>
      %81 = math.sqrt %80 : vector<8x1xf32>
      %c0_56 = arith.constant 0 : index
      %c0_57 = arith.constant 0 : index
      %82 = vector.load %arg12[%c0_56, %c0_57] : memref<8x1xf32, #tpu.memory_space<vmem>>, vector<8x1xf32>
      %cst_58 = arith.constant 9.99999996E-13 : f32
      %83 = vector.broadcast %cst_58 : f32 to vector<8x1xf32>
      %84 = arith.maximumf %82, %83 : vector<8x1xf32>
      %85 = math.sqrt %84 : vector<8x1xf32>
      %86 = arith.subf %81, %85 : vector<8x1xf32>
      %cst_59 = arith.constant 3.000000e-01 : f32
      %87 = vector.broadcast %cst_59 : f32 to vector<8x1xf32>
      %88 = arith.addf %86, %87 : vector<8x1xf32>
      %cst_60 = arith.constant 0.000000e+00 : f32
      %89 = vector.broadcast %cst_60 : f32 to vector<8x1xf32>
      %90 = arith.maximumf %88, %89 : vector<8x1xf32>
      %c0_61 = arith.constant 0 : index
      %c0_62 = arith.constant 0 : index
      %91 = vector.load %arg13[%c0_61, %c0_62] : memref<8x1xf32, #tpu.memory_space<vmem>>, vector<8x1xf32>
      %c0_63 = arith.constant 0 : index
      %c0_64 = arith.constant 0 : index
      %92 = vector.load %arg14[%c0_63, %c0_64] : memref<8x1xf32, #tpu.memory_space<vmem>>, vector<8x1xf32>
      %93 = math.log %92 : vector<8x1xf32>
      %94 = arith.addf %91, %93 : vector<8x1xf32>
      %c0_65 = arith.constant 0 : index
      %c0_66 = arith.constant 0 : index
      %95 = vector.load %arg15[%c0_65, %c0_66] : memref<8x1xf32, #tpu.memory_space<vmem>>, vector<8x1xf32>
      %96 = arith.subf %94, %95 : vector<8x1xf32>
      %c0_i32_67 = arith.constant 0 : i32
      %97 = vector.broadcast %c0_i32_67 : i32 to vector<8x1xi32>
      %98 = arith.cmpi sge, %3, %97 : vector<8x1xi32>
      %99 = arith.addf %90, %96 : vector<8x1xf32>
      %cst_68 = arith.constant 0.000000e+00 : f32
      %100 = vector.broadcast %cst_68 : f32 to vector<8x1xf32>
      %101 = arith.select %98, %99, %100 : vector<8x1xi1>, vector<8x1xf32>
      %102 = vector.shape_cast %101 : vector<8x1xf32> to vector<1x8x1xf32>
      %cst_69 = arith.constant dense<0.000000e+00> : vector<1xf32>
      %103 = vector.multi_reduction <add>, %102, %cst_69 [1, 2] : vector<1x8x1xf32> to vector<1xf32>
      %104 = vector.shape_cast %103 : vector<1xf32> to vector<1x1x1xf32>
      %105 = vector.extract %104[0, 0, 0] : f32 from vector<1x1x1xf32>
      %106 = vector.broadcast %105 : f32 to vector<1x1x1xf32>
      %c0_70 = arith.constant 0 : index
      %c0_71 = arith.constant 0 : index
      %c0_72 = arith.constant 0 : index
      %107 = vector.load %arg10[%c0_70, %c0_71, %c0_72] : memref<1x1x1xf32, #tpu.memory_space<vmem>>, vector<1x1x1xf32>
      tpu.vector_store %arg10[%c0_70, %c0_71, %c0_72], %106 {strides = array<i32>} : memref<1x1x1xf32, #tpu.memory_space<vmem>>, vector<1x1x1xf32>,
    } else {
    }
    return
  }
  func.func @transform_0(%arg0: i32, %arg1: i32) -> (i32, i32) {
    %c0_i32 = arith.constant 0 : i32
    %c0_i32_0 = arith.constant 0 : i32
    return %arg0, %c0_i32 : i32, i32
  }
  func.func @transform_1(%arg0: i32, %arg1: i32) -> (i32, i32) {
    %c0_i32 = arith.constant 0 : i32
    %c0_i32_0 = arith.constant 0 : i32
    return %arg0, %c0_i32 : i32, i32
  }
  func.func @transform_2(%arg0: i32, %arg1: i32) -> (i32, i32) {
    %c0_i32 = arith.constant 0 : i32
    %c0_i32_0 = arith.constant 0 : i32
    return %arg0, %c0_i32 : i32, i32
  }
  func.func @transform_3(%arg0: i32, %arg1: i32) -> (i32, i32) {
    %c0_i32 = arith.constant 0 : i32
    %c0_i32_0 = arith.constant 0 : i32
    return %c0_i32, %arg1 : i32, i32
  }
  func.func @transform_4(%arg0: i32, %arg1: i32) -> (i32, i32) {
    %c0_i32 = arith.constant 0 : i32
    %c0_i32_0 = arith.constant 0 : i32
    return %c0_i32, %arg1 : i32, i32
  }
  func.func @transform_5(%arg0: i32, %arg1: i32) -> (i32, i32) {
    %c0_i32 = arith.constant 0 : i32
    %c0_i32_0 = arith.constant 0 : i32
    return %c0_i32, %arg1 : i32, i32
  }
  func.func @transform_6(%arg0: i32, %arg1: i32) -> (i32, i32) {
    %c0_i32 = arith.constant 0 : i32
    %c0_i32_0 = arith.constant 0 : i32
    return %c0_i32, %arg1 : i32, i32
  }
  func.func @transform_7(%arg0: i32, %arg1: i32) -> (i32, i32) {
    %c0_i32 = arith.constant 0 : i32
    %c0_i32_0 = arith.constant 0 : i32
    return %c0_i32, %arg1 : i32, i32
  }
  func.func @transform_8(%arg0: i32, %arg1: i32) -> (i32, i32, i32) {
    %c0_i32 = arith.constant 0 : i32
    %c0_i32_0 = arith.constant 0 : i32
    %c0_i32_1 = arith.constant 0 : i32
    return %arg0, %c0_i32, %c0_i32_0 : i32, i32, i32
  }
}

</mosaic_0001>

<llo_original>
// kernel: tpu_custom_call.1
$region0: #{tpu_custom_call.1}
  #allocation0 [shape = 'u32[]', space=smem, size = 0x4, offset = 0x4, fixed_abs, tag = 'smem constant byte address 0x4 - core index']
  #allocation1 [shape = 'u32[144,128]{1,0:T(1,128)}', space=vmem, size = 0x12000, scoped, tag = 'internal scratch']
  #allocation2 [shape = 'f32[8,1]{1,0:T(8,128)}', space=vmem, size = 0x1000, scoped, tag = 'scratch operand']
  #allocation3 [shape = 'f32[8,1]{1,0:T(8,128)}', space=vmem, size = 0x1000, scoped, tag = 'scratch operand']
  #allocation4 [shape = 'f32[8,1]{1,0:T(8,128)}', space=vmem, size = 0x1000, scoped, tag = 'scratch operand']
  #allocation5 [shape = 'f32[8,1]{1,0:T(8,128)}', space=vmem, size = 0x1000, scoped, tag = 'scratch operand']
  #allocation6 [shape = 'f32[8,1]{1,0:T(8,128)}', space=vmem, size = 0x1000, scoped, tag = 'scratch operand']
  %s0 = inlined_call_operand.vmem [shape: f32[8,128], index: 0, kind: input, shape index: {}]
  %s1 = inlined_call_operand.vmem [shape: s32[8,1], index: 1, kind: input, shape index: {}]
  %s2 = inlined_call_operand.vmem [shape: f32[8,1], index: 2, kind: input, shape index: {}]
  %s3 = inlined_call_operand.hbm [shape: f32[128,256], index: 3, kind: input, shape index: {}]
  %s4 = inlined_call_operand.vmem [shape: s32[1,256], index: 4, kind: input, shape index: {}]
  %s5 = inlined_call_operand.vmem [shape: f32[1,256], index: 5, kind: input, shape index: {}]
  %s6 = inlined_call_operand.vmem [shape: s32[1,256], index: 6, kind: input, shape index: {}]
  %s7 = inlined_call_operand.vmem [shape: f32[1,256], index: 7, kind: input, shape index: {}]
  %s8 = inlined_call_operand.hbm [shape: f32[1,1,1], index: 8, kind: output, shape index: {}]
  %s9 = sld [smem:[#allocation0]]
  $region54: #{tpu_custom_call.1} parent=0
    _
  %s11 = ssub.s32 1, %s9
  %s12 = scalar_select 0, %s11, %s9
  $region1: #{tpu_custom_call.1} parent=0
    #allocation7 [shape = 'u8[131072]{0}', space=vmem, size = 0x20000, scoped, tag = 'input window, operand 3, single buffered']
    #allocation8 [shape = 's32[1]{0}', space=sflag, size = 0x4, scoped, tag = 'scoped memory for tpu_custom_call.1']
    #allocation9 [shape = 's32[1]{0}', space=sflag, size = 0x4, scoped, tag = 'scoped memory for tpu_custom_call.1']
    #allocation10 [shape = 'u8[512]{0}', space=vmem, size = 0x400, scoped, tag = 'output window, operand 0, single buffered']
    %13 = vsyncpa [#allocation8], 0
    %14 = vsyncpa [#allocation9], 0
    // Predicated region
    $region2: #{tpu_custom_call.1} parent=1 // pred_check
      _
    $region3: #{tpu_custom_call.1} parent=1 // pred_check_branch
      %16 = sbr.rel (0) target = $region5
    $region4: #{tpu_custom_call.1} parent=1 // pred_region
      _
    $region5: #{tpu_custom_call.1} parent=1 // pred_fallthru
      _
    // Predicated region
    $region6: #{tpu_custom_call.1} parent=1 // pred_check
      _
    $region7: #{tpu_custom_call.1} parent=1 // pred_check_branch
      %18 = sbr.rel (0) target = $region9
    $region8: #{tpu_custom_call.1} parent=1 // pred_region
      _
    $region9: #{tpu_custom_call.1} parent=1 // pred_fallthru
      _
    // Predicated region
    $region10: #{tpu_custom_call.1} parent=1 // pred_check
      _
    $region11: #{tpu_custom_call.1} parent=1 // pred_check_branch
      %20 = sbr.rel (0) target = $region13
    $region12: #{tpu_custom_call.1} parent=1 // pred_region
      _
    $region13: #{tpu_custom_call.1} parent=1 // pred_fallthru
      _
    // Predicated region
    $region14: #{tpu_custom_call.1} parent=1 // pred_check
      _
    $region15: #{tpu_custom_call.1} parent=1 // pred_check_branch
      %22 = sbr.rel (0) target = $region17
    $region16: #{tpu_custom_call.1} parent=1 // pred_region
      %s24 = ssub.s32 4096, 4096
      %25 = vsyncadd [#allocation8], %s24
      %s26 = sshll.u32 [#allocation7], 4
      %s27 = int_to_ptr.vmem [resolvable:$true] %s26
      %32 = dma.hbm_to_vmem [thread:$0]  %s3, 4096, %s27, [#allocation8], 256, 256, 16
    $region17: #{tpu_custom_call.1} parent=1 // pred_fallthru
      _
    // Predicated region
    $region18: #{tpu_custom_call.1} parent=1 // pred_check
      _
    $region19: #{tpu_custom_call.1} parent=1 // pred_check_branch
      %34 = sbr.rel (0) target = $region21
    $region20: #{tpu_custom_call.1} parent=1 // pred_region
      _
    $region21: #{tpu_custom_call.1} parent=1 // pred_fallthru
      _
    // Predicated region
    $region22: #{tpu_custom_call.1} parent=1 // pred_check
      _
    $region23: #{tpu_custom_call.1} parent=1 // pred_check_branch
      %36 = sbr.rel (0) target = $region25
    $region24: #{tpu_custom_call.1} parent=1 // pred_region
      _
    $region25: #{tpu_custom_call.1} parent=1 // pred_fallthru
      _
    // Predicated region
    $region26: #{tpu_custom_call.1} parent=1 // pred_check
      _
    $region27: #{tpu_custom_call.1} parent=1 // pred_check_branch
      %38 = sbr.rel (0) target = $region29
    $region28: #{tpu_custom_call.1} parent=1 // pred_region
      _
    $region29: #{tpu_custom_call.1} parent=1 // pred_fallthru
      _
    // Predicated region
    $region30: #{tpu_custom_call.1} parent=1 // pred_check
      _
    $region31: #{tpu_custom_call.1} parent=1 // pred_check_branch
      %40 = sbr.rel (0) target = $region33
    $region32: #{tpu_custom_call.1} parent=1 // pred_region
      _
    $region33: #{tpu_custom_call.1} parent=1 // pred_fallthru
      _
    // Predicated region
    $region34: #{tpu_custom_call.1} parent=1 // pred_check
      _
    $region35: #{tpu_custom_call.1} parent=1 // pred_check_branch
      %42 = sbr.rel (0) target = $region37
    $region36: #{tpu_custom_call.1} parent=1 // pred_region
      %43 = dma.done [#allocation8], 4096
    $region37: #{tpu_custom_call.1} parent=1 // pred_fallthru
      _
    %p44 = scmp.eq.s32.totalorder 0, 0
    // Predicated region
    $region38: #{tpu_custom_call.1} parent=1 // pred_check
      %p45 = pneg %p44
    $region39: #{tpu_custom_call.1} parent=1 // pred_check_branch
      %47 = sbr.rel (%p45) target = $region41
    $region40: #{tpu_custom_call.1} parent=1 // pred_region
      %vm48 = vcmask 7168
      %49 = vst.msk [vmem:[#allocation2] sm:$0xff] %vm48, -inf
      %50 = vst.msk [vmem:[#allocation3] sm:$0xff] %vm48, inf
      %51 = vst.msk [vmem:[#allocation4] sm:$0xff] %vm48, -1e+30
      %52 = vst.msk [vmem:[#allocation5] sm:$0xff] %vm48, 0.0
      %53 = vst.msk [vmem:[#allocation6] sm:$0xff] %vm48, 0.0
    $region41: #{tpu_custom_call.1} parent=1 // pred_fallthru
      _
    %v54 = vld [vmem:[%s1] sm:$0xff]
    %v55 = vld [vmem:[%s2] sm:$0xff]
    %v56 = vld [vmem:[%s4] sm:$0x3]
    %v57 = vld [vmem:[%s5] sm:$0x3]
    %v58 = vld [vmem:[%s6] sm:$0x3]
    %v59 = vld [vmem:[%s7] sm:$0x3]
    %v60 = vld [vmem:[%s0] sm:$0xff]
    %v61 = vld [vmem:[#allocation7] sm:$0xff]
    %v62 = vld [vmem:[#allocation7 + $0x8] sm:$0xff]
    %v63 = vld [vmem:[#allocation7 + $0x10] sm:$0xff]
    %v64 = vld [vmem:[#allocation7 + $0x18] sm:$0xff]
    %v65 = vld [vmem:[#allocation7 + $0x20] sm:$0xff]
    %v66 = vld [vmem:[#allocation7 + $0x28] sm:$0xff]
    %v67 = vld [vmem:[#allocation7 + $0x30] sm:$0xff]
    %v68 = vld [vmem:[#allocation7 + $0x38] sm:$0xff]
    %v69 = vld [vmem:[#allocation7 + $0x40] sm:$0xff]
    %v70 = vld [vmem:[#allocation7 + $0x48] sm:$0xff]
    %v71 = vld [vmem:[#allocation7 + $0x50] sm:$0xff]
    %v72 = vld [vmem:[#allocation7 + $0x58] sm:$0xff]
    %v73 = vld [vmem:[#allocation7 + $0x60] sm:$0xff]
    %v74 = vld [vmem:[#allocation7 + $0x68] sm:$0xff]
    %v75 = vld [vmem:[#allocation7 + $0x70] sm:$0xff]
    %v76 = vld [vmem:[#allocation7 + $0x78] sm:$0xff]
    %v77 = vld [vmem:[#allocation7 + $0x80] sm:$0xff]
    %v78 = vld [vmem:[#allocation7 + $0x88] sm:$0xff]
    %v79 = vld [vmem:[#allocation7 + $0x90] sm:$0xff]
    %v80 = vld [vmem:[#allocation7 + $0x98] sm:$0xff]
    %v81 = vld [vmem:[#allocation7 + $0xa0] sm:$0xff]
    %v82 = vld [vmem:[#allocation7 + $0xa8] sm:$0xff]
    %v83 = vld [vmem:[#allocation7 + $0xb0] sm:$0xff]
    %v84 = vld [vmem:[#allocation7 + $0xb8] sm:$0xff]
    %v85 = vld [vmem:[#allocation7 + $0xc0] sm:$0xff]
    %v86 = vld [vmem:[#allocation7 + $0xc8] sm:$0xff]
    %v87 = vld [vmem:[#allocation7 + $0xd0] sm:$0xff]
    %v88 = vld [vmem:[#allocation7 + $0xd8] sm:$0xff]
    %v89 = vld [vmem:[#allocation7 + $0xe0] sm:$0xff]
    %v90 = vld [vmem:[#allocation7 + $0xe8] sm:$0xff]
    %v91 = vld [vmem:[#allocation7 + $0xf0] sm:$0xff]
    %v92 = vld [vmem:[#allocation7 + $0xf8] sm:$0xff]
    %v93 = vand.u32 %v62, 4294901760
    %94 = vmatprep.subr.mxu0 %v93
    %v95 = vand.u32 %v61, 4294901760
    %96 = vmatpush1.msra.mxu0 %v95
    %v97 = vand.u32 %v64, 4294901760
    %98 = vmatprep.subr.mxu0 %v97
    %v99 = vand.u32 %v63, 4294901760
    %100 = vmatpush1.msra.mxu0 %v99
    %v101 = vand.u32 %v66, 4294901760
    %102 = vmatprep.subr.mxu0 %v101
    %v103 = vand.u32 %v65, 4294901760
    %104 = vmatpush1.msra.mxu0 %v103
    %v105 = vand.u32 %v68, 4294901760
    %106 = vmatprep.subr.mxu0 %v105
    %v107 = vand.u32 %v67, 4294901760
    %108 = vmatpush1.msra.mxu0 %v107
    %v109 = vand.u32 %v70, 4294901760
    %110 = vmatprep.subr.mxu0 %v109
    %v111 = vand.u32 %v69, 4294901760
    %112 = vmatpush1.msra.mxu0 %v111
    %v113 = vand.u32 %v72, 4294901760
    %114 = vmatprep.subr.mxu0 %v113
    %v115 = vand.u32 %v71, 4294901760
    %116 = vmatpush1.msra.mxu0 %v115
    %v117 = vand.u32 %v74, 4294901760
    %118 = vmatprep.subr.mxu0 %v117
    %v119 = vand.u32 %v73, 4294901760
    %120 = vmatpush1.msra.mxu0 %v119
    %v121 = vand.u32 %v76, 4294901760
    %122 = vmatprep.subr.mxu0 %v121
    %v123 = vand.u32 %v75, 4294901760
    %124 = vmatpush1.msra.mxu0 %v123
    %v125 = vand.u32 %v78, 4294901760
    %126 = vmatprep.subr.mxu0 %v125
    %v127 = vand.u32 %v77, 4294901760
    %128 = vmatpush1.msra.mxu0 %v127
    %v129 = vand.u32 %v80, 4294901760
    %130 = vmatprep.subr.mxu0 %v129
    %v131 = vand.u32 %v79, 4294901760
    %132 = vmatpush1.msra.mxu0 %v131
    %v133 = vand.u32 %v82, 4294901760
    %134 = vmatprep.subr.mxu0 %v133
    %v135 = vand.u32 %v81, 4294901760
    %136 = vmatpush1.msra.mxu0 %v135
    %v137 = vand.u32 %v84, 4294901760
    %138 = vmatprep.subr.mxu0 %v137
    %v139 = vand.u32 %v83, 4294901760
    %140 = vmatpush1.msra.mxu0 %v139
    %v141 = vand.u32 %v86, 4294901760
    %142 = vmatprep.subr.mxu0 %v141
    %v143 = vand.u32 %v85, 4294901760
    %144 = vmatpush1.msra.mxu0 %v143
    %v145 = vand.u32 %v88, 4294901760
    %146 = vmatprep.subr.mxu0 %v145
    %v147 = vand.u32 %v87, 4294901760
    %148 = vmatpush1.msra.mxu0 %v147
    %v149 = vand.u32 %v90, 4294901760
    %150 = vmatprep.subr.mxu0 %v149
    %v151 = vand.u32 %v89, 4294901760
    %152 = vmatpush1.msra.mxu0 %v151
    %v153 = vand.u32 %v92, 4294901760
    %154 = vmatprep.subr.mxu0 %v153
    %v155 = vand.u32 %v91, 4294901760
    %156 = vmatpush1.msra.mxu0 %v155
    %157 = vmatprep.subr.mxu0 0.0
    %158 = vmatpush1.msra.mxu0 0.0
    %159 = vmatprep.subr.mxu0 0.0
    %160 = vmatpush1.msra.mxu0 0.0
    %161 = vmatprep.subr.mxu0 0.0
    %162 = vmatpush1.msra.mxu0 0.0
    %163 = vmatprep.subr.mxu0 0.0
    %164 = vmatpush1.msra.mxu0 0.0
    %165 = vmatprep.subr.mxu0 0.0
    %166 = vmatpush1.msra.mxu0 0.0
    %167 = vmatprep.subr.mxu0 0.0
    %168 = vmatpush1.msra.mxu0 0.0
    %169 = vmatprep.subr.mxu0 0.0
    %170 = vmatpush1.msra.mxu0 0.0
    %171 = vmatprep.subr.mxu0 0.0
    %172 = vmatpush1.msra.mxu0 0.0
    %173 = vmatprep.subr.mxu0 0.0
    %174 = vmatpush1.msra.mxu0 0.0
    %175 = vmatprep.subr.mxu0 0.0
    %176 = vmatpush1.msra.mxu0 0.0
    %177 = vmatprep.subr.mxu0 0.0
    %178 = vmatpush1.msra.mxu0 0.0
    %179 = vmatprep.subr.mxu0 0.0
    %180 = vmatpush1.msra.mxu0 0.0
    %181 = vmatprep.subr.mxu0 0.0
    %182 = vmatpush1.msra.mxu0 0.0
    %183 = vmatprep.subr.mxu0 0.0
    %184 = vmatpush1.msra.mxu0 0.0
    %185 = vmatprep.subr.mxu0 0.0
    %186 = vmatpush1.msra.mxu0 0.0
    %187 = vmatprep.subr.mxu0 0.0
    %188 = vmatpush1.msra.mxu0 0.0
    %189 = vmatprep.mubr.f32.mxu0 0.0
    %v190 = vand.u32 %v60, 4294901760
    %v191 = vsub.f32 %v60, %v190
    %v192 = vand.u32 %v191, 4294901760
    %v193 = vsub.f32 %v191, %v192
    %v194 = vand.u32 %v193, 4294901760
    %195 = vmatmul.mubr.f32.gmra.mrb[0].mxu0 %v194
    %v196 = vpop.f32.mrb[0].mxu0
    %v197 = vadd.f32 0.0, %v196
    %v198 = vpop.f32.mrb[0].mxu0
    %v199 = vadd.f32 0.0, %v198
    %200 = vdwg.mxu0
    %v201 = vand.u32 %v62, 4294901760
    %v202 = vsub.f32 %v62, %v201
    %v203 = vand.u32 %v202, 4294901760
    %v204 = vsub.f32 %v202, %v203
    %v205 = vand.u32 %v204, 4294901760
    %206 = vmatprep.subr.mxu0 %v205
    %v207 = vand.u32 %v61, 4294901760
    %v208 = vsub.f32 %v61, %v207
    %v209 = vand.u32 %v208, 4294901760
    %v210 = vsub.f32 %v208, %v209
    %v211 = vand.u32 %v210, 4294901760
    %212 = vmatpush1.msra.mxu0 %v211
    %v213 = vand.u32 %v64, 4294901760
    %v214 = vsub.f32 %v64, %v213
    %v215 = vand.u32 %v214, 4294901760
    %v216 = vsub.f32 %v214, %v215
    %v217 = vand.u32 %v216, 4294901760
    %218 = vmatprep.subr.mxu0 %v217
    %v219 = vand.u32 %v63, 4294901760
    %v220 = vsub.f32 %v63, %v219
    %v221 = vand.u32 %v220, 4294901760
    %v222 = vsub.f32 %v220, %v221
    %v223 = vand.u32 %v222, 4294901760
    %224 = vmatpush1.msra.mxu0 %v223
    %v225 = vand.u32 %v66, 4294901760
    %v226 = vsub.f32 %v66, %v225
    %v227 = vand.u32 %v226, 4294901760
    %v228 = vsub.f32 %v226, %v227
    %v229 = vand.u32 %v228, 4294901760
    %230 = vmatprep.subr.mxu0 %v229
    %v231 = vand.u32 %v65, 4294901760
    %v232 = vsub.f32 %v65, %v231
    %v233 = vand.u32 %v232, 4294901760
    %v234 = vsub.f32 %v232, %v233
    %v235 = vand.u32 %v234, 4294901760
    %236 = vmatpush1.msra.mxu0 %v235
    %v237 = vand.u32 %v68, 4294901760
    %v238 = vsub.f32 %v68, %v237
    %v239 = vand.u32 %v238, 4294901760
    %v240 = vsub.f32 %v238, %v239
    %v241 = vand.u32 %v240, 4294901760
    %242 = vmatprep.subr.mxu0 %v241
    %v243 = vand.u32 %v67, 4294901760
    %v244 = vsub.f32 %v67, %v243
    %v245 = vand.u32 %v244, 4294901760
    %v246 = vsub.f32 %v244, %v245
    %v247 = vand.u32 %v246, 4294901760
    %248 = vmatpush1.msra.mxu0 %v247
    %v249 = vand.u32 %v70, 4294901760
    %v250 = vsub.f32 %v70, %v249
    %v251 = vand.u32 %v250, 4294901760
    %v252 = vsub.f32 %v250, %v251
    %v253 = vand.u32 %v252, 4294901760
    %254 = vmatprep.subr.mxu0 %v253
    %v255 = vand.u32 %v69, 4294901760
    %v256 = vsub.f32 %v69, %v255
    %v257 = vand.u32 %v256, 4294901760
    %v258 = vsub.f32 %v256, %v257
    %v259 = vand.u32 %v258, 4294901760
    %260 = vmatpush1.msra.mxu0 %v259
    %v261 = vand.u32 %v72, 4294901760
    %v262 = vsub.f32 %v72, %v261
    %v263 = vand.u32 %v262, 4294901760
    %v264 = vsub.f32 %v262, %v263
    %v265 = vand.u32 %v264, 4294901760
    %266 = vmatprep.subr.mxu0 %v265
    %v267 = vand.u32 %v71, 4294901760
    %v268 = vsub.f32 %v71, %v267
    %v269 = vand.u32 %v268, 4294901760
    %v270 = vsub.f32 %v268, %v269
    %v271 = vand.u32 %v270, 4294901760
    %272 = vmatpush1.msra.mxu0 %v271
    %v273 = vand.u32 %v74, 4294901760
    %v274 = vsub.f32 %v74, %v273
    %v275 = vand.u32 %v274, 4294901760
    %v276 = vsub.f32 %v274, %v275
    %v277 = vand.u32 %v276, 4294901760
    %278 = vmatprep.subr.mxu0 %v277
    %v279 = vand.u32 %v73, 4294901760
    %v280 = vsub.f32 %v73, %v279
    %v281 = vand.u32 %v280, 4294901760
    %v282 = vsub.f32 %v280, %v281
    %v283 = vand.u32 %v282, 4294901760
    %284 = vmatpush1.msra.mxu0 %v283
    %v285 = vand.u32 %v76, 4294901760
    %v286 = vsub.f32 %v76, %v285
    %v287 = vand.u32 %v286, 4294901760
    %v288 = vsub.f32 %v286, %v287
    %v289 = vand.u32 %v288, 4294901760
    %290 = vmatprep.subr.mxu0 %v289
    %v291 = vand.u32 %v75, 4294901760
    %v292 = vsub.f32 %v75, %v291
    %v293 = vand.u32 %v292, 4294901760
    %v294 = vsub.f32 %v292, %v293
    %v295 = vand.u32 %v294, 4294901760
    %296 = vmatpush1.msra.mxu0 %v295
    %v297 = vand.u32 %v78, 4294901760
    %v298 = vsub.f32 %v78, %v297
    %v299 = vand.u32 %v298, 4294901760
    %v300 = vsub.f32 %v298, %v299
    %v301 = vand.u32 %v300, 4294901760
    %302 = vmatprep.subr.mxu0 %v301
    %v303 = vand.u32 %v77, 4294901760
    %v304 = vsub.f32 %v77, %v303
    %v305 = vand.u32 %v304, 4294901760
    %v306 = vsub.f32 %v304, %v305
    %v307 = vand.u32 %v306, 4294901760
    %308 = vmatpush1.msra.mxu0 %v307
    %v309 = vand.u32 %v80, 4294901760
    %v310 = vsub.f32 %v80, %v309
    %v311 = vand.u32 %v310, 4294901760
    %v312 = vsub.f32 %v310, %v311
    %v313 = vand.u32 %v312, 4294901760
    %314 = vmatprep.subr.mxu0 %v313
    %v315 = vand.u32 %v79, 4294901760
    %v316 = vsub.f32 %v79, %v315
    %v317 = vand.u32 %v316, 4294901760
    %v318 = vsub.f32 %v316, %v317
    %v319 = vand.u32 %v318, 4294901760
    %320 = vmatpush1.msra.mxu0 %v319
    %v321 = vand.u32 %v82, 4294901760
    %v322 = vsub.f32 %v82, %v321
    %v323 = vand.u32 %v322, 4294901760
    %v324 = vsub.f32 %v322, %v323
    %v325 = vand.u32 %v324, 4294901760
    %326 = vmatprep.subr.mxu0 %v325
    %v327 = vand.u32 %v81, 4294901760
    %v328 = vsub.f32 %v81, %v327
    %v329 = vand.u32 %v328, 4294901760
    %v330 = vsub.f32 %v328, %v329
    %v331 = vand.u32 %v330, 4294901760
    %332 = vmatpush1.msra.mxu0 %v331
    %v333 = vand.u32 %v84, 4294901760
    %v334 = vsub.f32 %v84, %v333
    %v335 = vand.u32 %v334, 4294901760
    %v336 = vsub.f32 %v334, %v335
    %v337 = vand.u32 %v336, 4294901760
    %338 = vmatprep.subr.mxu0 %v337
    %v339 = vand.u32 %v83, 4294901760
    %v340 = vsub.f32 %v83, %v339
    %v341 = vand.u32 %v340, 4294901760
    %v342 = vsub.f32 %v340, %v341
    %v343 = vand.u32 %v342, 4294901760
    %344 = vmatpush1.msra.mxu0 %v343
    %v345 = vand.u32 %v86, 4294901760
    %v346 = vsub.f32 %v86, %v345
    %v347 = vand.u32 %v346, 4294901760
    %v348 = vsub.f32 %v346, %v347
    %v349 = vand.u32 %v348, 4294901760
    %350 = vmatprep.subr.mxu0 %v349
    %v351 = vand.u32 %v85, 4294901760
    %v352 = vsub.f32 %v85, %v351
    %v353 = vand.u32 %v352, 4294901760
    %v354 = vsub.f32 %v352, %v353
    %v355 = vand.u32 %v354, 4294901760
    %356 = vmatpush1.msra.mxu0 %v355
    %v357 = vand.u32 %v88, 4294901760
    %v358 = vsub.f32 %v88, %v357
    %v359 = vand.u32 %v358, 4294901760
    %v360 = vsub.f32 %v358, %v359
    %v361 = vand.u32 %v360, 4294901760
    %362 = vmatprep.subr.mxu0 %v361
    %v363 = vand.u32 %v87, 4294901760
    %v364 = vsub.f32 %v87, %v363
    %v365 = vand.u32 %v364, 4294901760
    %v366 = vsub.f32 %v364, %v365
    %v367 = vand.u32 %v366, 4294901760
    %368 = vmatpush1.msra.mxu0 %v367
    %v369 = vand.u32 %v90, 4294901760
    %v370 = vsub.f32 %v90, %v369
    %v371 = vand.u32 %v370, 4294901760
    %v372 = vsub.f32 %v370, %v371
    %v373 = vand.u32 %v372, 4294901760
    %374 = vmatprep.subr.mxu0 %v373
    %v375 = vand.u32 %v89, 4294901760
    %v376 = vsub.f32 %v89, %v375
    %v377 = vand.u32 %v376, 4294901760
    %v378 = vsub.f32 %v376, %v377
    %v379 = vand.u32 %v378, 4294901760
    %380 = vmatpush1.msra.mxu0 %v379
    %v381 = vand.u32 %v92, 4294901760
    %v382 = vsub.f32 %v92, %v381
    %v383 = vand.u32 %v382, 4294901760
    %v384 = vsub.f32 %v382, %v383
    %v385 = vand.u32 %v384, 4294901760
    %386 = vmatprep.subr.mxu0 %v385
    %v387 = vand.u32 %v91, 4294901760
    %v388 = vsub.f32 %v91, %v387
    %v389 = vand.u32 %v388, 4294901760
    %v390 = vsub.f32 %v388, %v389
    %v391 = vand.u32 %v390, 4294901760
    %392 = vmatpush1.msra.mxu0 %v391
    %393 = vmatprep.subr.mxu0 0.0
    %394 = vmatpush1.msra.mxu0 0.0
    %395 = vmatprep.subr.mxu0 0.0
    %396 = vmatpush1.msra.mxu0 0.0
    %397 = vmatprep.subr.mxu0 0.0
    %398 = vmatpush1.msra.mxu0 0.0
    %399 = vmatprep.subr.mxu0 0.0
    %400 = vmatpush1.msra.mxu0 0.0
    %401 = vmatprep.subr.mxu0 0.0
    %402 = vmatpush1.msra.mxu0 0.0
    %403 = vmatprep.subr.mxu0 0.0
    %404 = vmatpush1.msra.mxu0 0.0
    %405 = vmatprep.subr.mxu0 0.0
    %406 = vmatpush1.msra.mxu0 0.0
    %407 = vmatprep.subr.mxu0 0.0
    %408 = vmatpush1.msra.mxu0 0.0
    %409 = vmatprep.subr.mxu0 0.0
    %410 = vmatpush1.msra.mxu0 0.0
    %411 = vmatprep.subr.mxu0 0.0
    %412 = vmatpush1.msra.mxu0 0.0
    %413 = vmatprep.subr.mxu0 0.0
    %414 = vmatpush1.msra.mxu0 0.0
    %415 = vmatprep.subr.mxu0 0.0
    %416 = vmatpush1.msra.mxu0 0.0
    %417 = vmatprep.subr.mxu0 0.0
    %418 = vmatpush1.msra.mxu0 0.0
    %419 = vmatprep.subr.mxu0 0.0
    %420 = vmatpush1.msra.mxu0 0.0
    %421 = vmatprep.subr.mxu0 0.0
    %422 = vmatpush1.msra.mxu0 0.0
    %423 = vmatprep.subr.mxu0 0.0
    %424 = vmatpush1.msra.mxu0 0.0
    %425 = vmatprep.mubr.f32.mxu0 0.0
    %v426 = vand.u32 %v60, 4294901760
    %427 = vmatmul.mubr.f32.gmra.mrb[0].mxu0 %v426
    %v428 = vpop.f32.mrb[0].mxu0
    %v429 = vadd.f32 %v197, %v428
    %v430 = vpop.f32.mrb[0].mxu0
    %v431 = vadd.f32 %v199, %v430
    %432 = vdwg.mxu0
    %v433 = vand.u32 %v62, 4294901760
    %v434 = vsub.f32 %v62, %v433
    %435 = vmatprep.subr.mxu0 %v434
    %v436 = vand.u32 %v61, 4294901760
    %v437 = vsub.f32 %v61, %v436
    %438 = vmatpush1.msra.mxu0 %v437
    %v439 = vand.u32 %v64, 4294901760
    %v440 = vsub.f32 %v64, %v439
    %441 = vmatprep.subr.mxu0 %v440
    %v442 = vand.u32 %v63, 4294901760
    %v443 = vsub.f32 %v63, %v442
    %444 = vmatpush1.msra.mxu0 %v443
    %v445 = vand.u32 %v66, 4294901760
    %v446 = vsub.f32 %v66, %v445
    %447 = vmatprep.subr.mxu0 %v446
    %v448 = vand.u32 %v65, 4294901760
    %v449 = vsub.f32 %v65, %v448
    %450 = vmatpush1.msra.mxu0 %v449
    %v451 = vand.u32 %v68, 4294901760
    %v452 = vsub.f32 %v68, %v451
    %453 = vmatprep.subr.mxu0 %v452
    %v454 = vand.u32 %v67, 4294901760
    %v455 = vsub.f32 %v67, %v454
    %456 = vmatpush1.msra.mxu0 %v455
    %v457 = vand.u32 %v70, 4294901760
    %v458 = vsub.f32 %v70, %v457
    %459 = vmatprep.subr.mxu0 %v458
    %v460 = vand.u32 %v69, 4294901760
    %v461 = vsub.f32 %v69, %v460
    %462 = vmatpush1.msra.mxu0 %v461
    %v463 = vand.u32 %v72, 4294901760
    %v464 = vsub.f32 %v72, %v463
    %465 = vmatprep.subr.mxu0 %v464
    %v466 = vand.u32 %v71, 4294901760
    %v467 = vsub.f32 %v71, %v466
    %468 = vmatpush1.msra.mxu0 %v467
    %v469 = vand.u32 %v74, 4294901760
    %v470 = vsub.f32 %v74, %v469
    %471 = vmatprep.subr.mxu0 %v470
    %v472 = vand.u32 %v73, 4294901760
    %v473 = vsub.f32 %v73, %v472
    %474 = vmatpush1.msra.mxu0 %v473
    %v475 = vand.u32 %v76, 4294901760
    %v476 = vsub.f32 %v76, %v475
    %477 = vmatprep.subr.mxu0 %v476
    %v478 = vand.u32 %v75, 4294901760
    %v479 = vsub.f32 %v75, %v478
    %480 = vmatpush1.msra.mxu0 %v479
    %v481 = vand.u32 %v78, 4294901760
    %v482 = vsub.f32 %v78, %v481
    %483 = vmatprep.subr.mxu0 %v482
    %v484 = vand.u32 %v77, 4294901760
    %v485 = vsub.f32 %v77, %v484
    %486 = vmatpush1.msra.mxu0 %v485
    %v487 = vand.u32 %v80, 4294901760
    %v488 = vsub.f32 %v80, %v487
    %489 = vmatprep.subr.mxu0 %v488
    %v490 = vand.u32 %v79, 4294901760
    %v491 = vsub.f32 %v79, %v490
    %492 = vmatpush1.msra.mxu0 %v491
    %v493 = vand.u32 %v82, 4294901760
    %v494 = vsub.f32 %v82, %v493
    %495 = vmatprep.subr.mxu0 %v494
    %v496 = vand.u32 %v81, 4294901760
    %v497 = vsub.f32 %v81, %v496
    %498 = vmatpush1.msra.mxu0 %v497
    %v499 = vand.u32 %v84, 4294901760
    %v500 = vsub.f32 %v84, %v499
    %501 = vmatprep.subr.mxu0 %v500
    %v502 = vand.u32 %v83, 4294901760
    %v503 = vsub.f32 %v83, %v502
    %504 = vmatpush1.msra.mxu0 %v503
    %v505 = vand.u32 %v86, 4294901760
    %v506 = vsub.f32 %v86, %v505
    %507 = vmatprep.subr.mxu0 %v506
    %v508 = vand.u32 %v85, 4294901760
    %v509 = vsub.f32 %v85, %v508
    %510 = vmatpush1.msra.mxu0 %v509
    %v511 = vand.u32 %v88, 4294901760
    %v512 = vsub.f32 %v88, %v511
    %513 = vmatprep.subr.mxu0 %v512
    %v514 = vand.u32 %v87, 4294901760
    %v515 = vsub.f32 %v87, %v514
    %516 = vmatpush1.msra.mxu0 %v515
    %v517 = vand.u32 %v90, 4294901760
    %v518 = vsub.f32 %v90, %v517
    %519 = vmatprep.subr.mxu0 %v518
    %v520 = vand.u32 %v89, 4294901760
    %v521 = vsub.f32 %v89, %v520
    %522 = vmatpush1.msra.mxu0 %v521
    %v523 = vand.u32 %v92, 4294901760
    %v524 = vsub.f32 %v92, %v523
    %525 = vmatprep.subr.mxu0 %v524
    %v526 = vand.u32 %v91, 4294901760
    %v527 = vsub.f32 %v91, %v526
    %528 = vmatpush1.msra.mxu0 %v527
    %529 = vmatprep.subr.mxu0 0.0
    %530 = vmatpush1.msra.mxu0 0.0
    %531 = vmatprep.subr.mxu0 0.0
    %532 = vmatpush1.msra.mxu0 0.0
    %533 = vmatprep.subr.mxu0 0.0
    %534 = vmatpush1.msra.mxu0 0.0
    %535 = vmatprep.subr.mxu0 0.0
    %536 = vmatpush1.msra.mxu0 0.0
    %537 = vmatprep.subr.mxu0 0.0
    %538 = vmatpush1.msra.mxu0 0.0
    %539 = vmatprep.subr.mxu0 0.0
    %540 = vmatpush1.msra.mxu0 0.0
    %541 = vmatprep.subr.mxu0 0.0
    %542 = vmatpush1.msra.mxu0 0.0
    %543 = vmatprep.subr.mxu0 0.0
    %544 = vmatpush1.msra.mxu0 0.0
    %545 = vmatprep.subr.mxu0 0.0
    %546 = vmatpush1.msra.mxu0 0.0
    %547 = vmatprep.subr.mxu0 0.0
    %548 = vmatpush1.msra.mxu0 0.0
    %549 = vmatprep.subr.mxu0 0.0
    %550 = vmatpush1.msra.mxu0 0.0
    %551 = vmatprep.subr.mxu0 0.0
    %552 = vmatpush1.msra.mxu0 0.0
    %553 = vmatprep.subr.mxu0 0.0
    %554 = vmatpush1.msra.mxu0 0.0
    %555 = vmatprep.subr.mxu0 0.0
    %556 = vmatpush1.msra.mxu0 0.0
    %557 = vmatprep.subr.mxu0 0.0
    %558 = vmatpush1.msra.mxu0 0.0
    %559 = vmatprep.subr.mxu0 0.0
    %560 = vmatpush1.msra.mxu0 0.0
    %561 = vmatprep.mubr.f32.mxu0 0.0
    %v562 = vand.u32 %v60, 4294901760
    %v563 = vsub.f32 %v60, %v562
    %564 = vmatmul.mubr.f32.gmra.mrb[0].mxu0 %v563
    %v565 = vpop.f32.mrb[0].mxu0
    %v566 = vadd.f32 %v429, %v565
    %v567 = vpop.f32.mrb[0].mxu0
    %v568 = vadd.f32 %v431, %v567
    %569 = vdwg.mxu0
    %v570 = vand.u32 %v62, 4294901760
    %571 = vmatprep.subr.mxu0 %v570
    %v572 = vand.u32 %v61, 4294901760
    %573 = vmatpush1.msra.mxu0 %v572
    %v574 = vand.u32 %v64, 4294901760
    %575 = vmatprep.subr.mxu0 %v574
    %v576 = vand.u32 %v63, 4294901760
    %577 = vmatpush1.msra.mxu0 %v576
    %v578 = vand.u32 %v66, 4294901760
    %579 = vmatprep.subr.mxu0 %v578
    %v580 = vand.u32 %v65, 4294901760
    %581 = vmatpush1.msra.mxu0 %v580
    %v582 = vand.u32 %v68, 4294901760
    %583 = vmatprep.subr.mxu0 %v582
    %v584 = vand.u32 %v67, 4294901760
    %585 = vmatpush1.msra.mxu0 %v584
    %v586 = vand.u32 %v70, 4294901760
    %587 = vmatprep.subr.mxu0 %v586
    %v588 = vand.u32 %v69, 4294901760
    %589 = vmatpush1.msra.mxu0 %v588
    %v590 = vand.u32 %v72, 4294901760
    %591 = vmatprep.subr.mxu0 %v590
    %v592 = vand.u32 %v71, 4294901760
    %593 = vmatpush1.msra.mxu0 %v592
    %v594 = vand.u32 %v74, 4294901760
    %595 = vmatprep.subr.mxu0 %v594
    %v596 = vand.u32 %v73, 4294901760
    %597 = vmatpush1.msra.mxu0 %v596
    %v598 = vand.u32 %v76, 4294901760
    %599 = vmatprep.subr.mxu0 %v598
    %v600 = vand.u32 %v75, 4294901760
    %601 = vmatpush1.msra.mxu0 %v600
    %v602 = vand.u32 %v78, 4294901760
    %603 = vmatprep.subr.mxu0 %v602
    %v604 = vand.u32 %v77, 4294901760
    %605 = vmatpush1.msra.mxu0 %v604
    %v606 = vand.u32 %v80, 4294901760
    %607 = vmatprep.subr.mxu0 %v606
    %v608 = vand.u32 %v79, 4294901760
    %609 = vmatpush1.msra.mxu0 %v608
    %v610 = vand.u32 %v82, 4294901760
    %611 = vmatprep.subr.mxu0 %v610
    %v612 = vand.u32 %v81, 4294901760
    %613 = vmatpush1.msra.mxu0 %v612
    %v614 = vand.u32 %v84, 4294901760
    %615 = vmatprep.subr.mxu0 %v614
    %v616 = vand.u32 %v83, 4294901760
    %617 = vmatpush1.msra.mxu0 %v616
    %v618 = vand.u32 %v86, 4294901760
    %619 = vmatprep.subr.mxu0 %v618
    %v620 = vand.u32 %v85, 4294901760
    %621 = vmatpush1.msra.mxu0 %v620
    %v622 = vand.u32 %v88, 4294901760
    %623 = vmatprep.subr.mxu0 %v622
    %v624 = vand.u32 %v87, 4294901760
    %625 = vmatpush1.msra.mxu0 %v624
    %v626 = vand.u32 %v90, 4294901760
    %627 = vmatprep.subr.mxu0 %v626
    %v628 = vand.u32 %v89, 4294901760
    %629 = vmatpush1.msra.mxu0 %v628
    %v630 = vand.u32 %v92, 4294901760
    %631 = vmatprep.subr.mxu0 %v630
    %v632 = vand.u32 %v91, 4294901760
    %633 = vmatpush1.msra.mxu0 %v632
    %634 = vmatprep.subr.mxu0 0.0
    %635 = vmatpush1.msra.mxu0 0.0
    %636 = vmatprep.subr.mxu0 0.0
    %637 = vmatpush1.msra.mxu0 0.0
    %638 = vmatprep.subr.mxu0 0.0
    %639 = vmatpush1.msra.mxu0 0.0
    %640 = vmatprep.subr.mxu0 0.0
    %641 = vmatpush1.msra.mxu0 0.0
    %642 = vmatprep.subr.mxu0 0.0
    %643 = vmatpush1.msra.mxu0 0.0
    %644 = vmatprep.subr.mxu0 0.0
    %645 = vmatpush1.msra.mxu0 0.0
    %646 = vmatprep.subr.mxu0 0.0
    %647 = vmatpush1.msra.mxu0 0.0
    %648 = vmatprep.subr.mxu0 0.0
    %649 = vmatpush1.msra.mxu0 0.0
    %650 = vmatprep.subr.mxu0 0.0
    %651 = vmatpush1.msra.mxu0 0.0
    %652 = vmatprep.subr.mxu0 0.0
    %653 = vmatpush1.msra.mxu0 0.0
    %654 = vmatprep.subr.mxu0 0.0
    %655 = vmatpush1.msra.mxu0 0.0
    %656 = vmatprep.subr.mxu0 0.0
    %657 = vmatpush1.msra.mxu0 0.0
    %658 = vmatprep.subr.mxu0 0.0
    %659 = vmatpush1.msra.mxu0 0.0
    %660 = vmatprep.subr.mxu0 0.0
    %661 = vmatpush1.msra.mxu0 0.0
    %662 = vmatprep.subr.mxu0 0.0
    %663 = vmatpush1.msra.mxu0 0.0
    %664 = vmatprep.subr.mxu0 0.0
    %665 = vmatpush1.msra.mxu0 0.0
    %666 = vmatprep.mubr.f32.mxu0 0.0
    %v667 = vand.u32 %v60, 4294901760
    %v668 = vsub.f32 %v60, %v667
    %v669 = vand.u32 %v668, 4294901760
    %670 = vmatmul.mubr.f32.gmra.mrb[0].mxu0 %v669
    %v671 = vpop.f32.mrb[0].mxu0
    %v672 = vadd.f32 %v566, %v671
    %v673 = vpop.f32.mrb[0].mxu0
    %v674 = vadd.f32 %v568, %v673
    %675 = vdwg.mxu0
    %v676 = vand.u32 %v62, 4294901760
    %v677 = vsub.f32 %v62, %v676
    %v678 = vand.u32 %v677, 4294901760
    %679 = vmatprep.subr.mxu0 %v678
    %v680 = vand.u32 %v61, 4294901760
    %v681 = vsub.f32 %v61, %v680
    %v682 = vand.u32 %v681, 4294901760
    %683 = vmatpush1.msra.mxu0 %v682
    %v684 = vand.u32 %v64, 4294901760
    %v685 = vsub.f32 %v64, %v684
    %v686 = vand.u32 %v685, 4294901760
    %687 = vmatprep.subr.mxu0 %v686
    %v688 = vand.u32 %v63, 4294901760
    %v689 = vsub.f32 %v63, %v688
    %v690 = vand.u32 %v689, 4294901760
    %691 = vmatpush1.msra.mxu0 %v690
    %v692 = vand.u32 %v66, 4294901760
    %v693 = vsub.f32 %v66, %v692
    %v694 = vand.u32 %v693, 4294901760
    %695 = vmatprep.subr.mxu0 %v694
    %v696 = vand.u32 %v65, 4294901760
    %v697 = vsub.f32 %v65, %v696
    %v698 = vand.u32 %v697, 4294901760
    %699 = vmatpush1.msra.mxu0 %v698
    %v700 = vand.u32 %v68, 4294901760
    %v701 = vsub.f32 %v68, %v700
    %v702 = vand.u32 %v701, 4294901760
    %703 = vmatprep.subr.mxu0 %v702
    %v704 = vand.u32 %v67, 4294901760
    %v705 = vsub.f32 %v67, %v704
    %v706 = vand.u32 %v705, 4294901760
    %707 = vmatpush1.msra.mxu0 %v706
    %v708 = vand.u32 %v70, 4294901760
    %v709 = vsub.f32 %v70, %v708
    %v710 = vand.u32 %v709, 4294901760
    %711 = vmatprep.subr.mxu0 %v710
    %v712 = vand.u32 %v69, 4294901760
    %v713 = vsub.f32 %v69, %v712
    %v714 = vand.u32 %v713, 4294901760
    %715 = vmatpush1.msra.mxu0 %v714
    %v716 = vand.u32 %v72, 4294901760
    %v717 = vsub.f32 %v72, %v716
    %v718 = vand.u32 %v717, 4294901760
    %719 = vmatprep.subr.mxu0 %v718
    %v720 = vand.u32 %v71, 4294901760
    %v721 = vsub.f32 %v71, %v720
    %v722 = vand.u32 %v721, 4294901760
    %723 = vmatpush1.msra.mxu0 %v722
    %v724 = vand.u32 %v74, 4294901760
    %v725 = vsub.f32 %v74, %v724
    %v726 = vand.u32 %v725, 4294901760
    %727 = vmatprep.subr.mxu0 %v726
    %v728 = vand.u32 %v73, 4294901760
    %v729 = vsub.f32 %v73, %v728
    %v730 = vand.u32 %v729, 4294901760
    %731 = vmatpush1.msra.mxu0 %v730
    %v732 = vand.u32 %v76, 4294901760
    %v733 = vsub.f32 %v76, %v732
    %v734 = vand.u32 %v733, 4294901760
    %735 = vmatprep.subr.mxu0 %v734
    %v736 = vand.u32 %v75, 4294901760
    %v737 = vsub.f32 %v75, %v736
    %v738 = vand.u32 %v737, 4294901760
    %739 = vmatpush1.msra.mxu0 %v738
    %v740 = vand.u32 %v78, 4294901760
    %v741 = vsub.f32 %v78, %v740
    %v742 = vand.u32 %v741, 4294901760
    %743 = vmatprep.subr.mxu0 %v742
    %v744 = vand.u32 %v77, 4294901760
    %v745 = vsub.f32 %v77, %v744
    %v746 = vand.u32 %v745, 4294901760
    %747 = vmatpush1.msra.mxu0 %v746
    %v748 = vand.u32 %v80, 4294901760
    %v749 = vsub.f32 %v80, %v748
    %v750 = vand.u32 %v749, 4294901760
    %751 = vmatprep.subr.mxu0 %v750
    %v752 = vand.u32 %v79, 4294901760
    %v753 = vsub.f32 %v79, %v752
    %v754 = vand.u32 %v753, 4294901760
    %755 = vmatpush1.msra.mxu0 %v754
    %v756 = vand.u32 %v82, 4294901760
    %v757 = vsub.f32 %v82, %v756
    %v758 = vand.u32 %v757, 4294901760
    %759 = vmatprep.subr.mxu0 %v758
    %v760 = vand.u32 %v81, 4294901760
    %v761 = vsub.f32 %v81, %v760
    %v762 = vand.u32 %v761, 4294901760
    %763 = vmatpush1.msra.mxu0 %v762
    %v764 = vand.u32 %v84, 4294901760
    %v765 = vsub.f32 %v84, %v764
    %v766 = vand.u32 %v765, 4294901760
    %767 = vmatprep.subr.mxu0 %v766
    %v768 = vand.u32 %v83, 4294901760
    %v769 = vsub.f32 %v83, %v768
    %v770 = vand.u32 %v769, 4294901760
    %771 = vmatpush1.msra.mxu0 %v770
    %v772 = vand.u32 %v86, 4294901760
    %v773 = vsub.f32 %v86, %v772
    %v774 = vand.u32 %v773, 4294901760
    %775 = vmatprep.subr.mxu0 %v774
    %v776 = vand.u32 %v85, 4294901760
    %v777 = vsub.f32 %v85, %v776
    %v778 = vand.u32 %v777, 4294901760
    %779 = vmatpush1.msra.mxu0 %v778
    %v780 = vand.u32 %v88, 4294901760
    %v781 = vsub.f32 %v88, %v780
    %v782 = vand.u32 %v781, 4294901760
    %783 = vmatprep.subr.mxu0 %v782
    %v784 = vand.u32 %v87, 4294901760
    %v785 = vsub.f32 %v87, %v784
    %v786 = vand.u32 %v785, 4294901760
    %787 = vmatpush1.msra.mxu0 %v786
    %v788 = vand.u32 %v90, 4294901760
    %v789 = vsub.f32 %v90, %v788
    %v790 = vand.u32 %v789, 4294901760
    %791 = vmatprep.subr.mxu0 %v790
    %v792 = vand.u32 %v89, 4294901760
    %v793 = vsub.f32 %v89, %v792
    %v794 = vand.u32 %v793, 4294901760
    %795 = vmatpush1.msra.mxu0 %v794
    %v796 = vand.u32 %v92, 4294901760
    %v797 = vsub.f32 %v92, %v796
    %v798 = vand.u32 %v797, 4294901760
    %799 = vmatprep.subr.mxu0 %v798
    %v800 = vand.u32 %v91, 4294901760
    %v801 = vsub.f32 %v91, %v800
    %v802 = vand.u32 %v801, 4294901760
    %803 = vmatpush1.msra.mxu0 %v802
    %804 = vmatprep.subr.mxu0 0.0
    %805 = vmatpush1.msra.mxu0 0.0
    %806 = vmatprep.subr.mxu0 0.0
    %807 = vmatpush1.msra.mxu0 0.0
    %808 = vmatprep.subr.mxu0 0.0
    %809 = vmatpush1.msra.mxu0 0.0
    %810 = vmatprep.subr.mxu0 0.0
    %811 = vmatpush1.msra.mxu0 0.0
    %812 = vmatprep.subr.mxu0 0.0
    %813 = vmatpush1.msra.mxu0 0.0
    %814 = vmatprep.subr.mxu0 0.0
    %815 = vmatpush1.msra.mxu0 0.0
    %816 = vmatprep.subr.mxu0 0.0
    %817 = vmatpush1.msra.mxu0 0.0
    %818 = vmatprep.subr.mxu0 0.0
    %819 = vmatpush1.msra.mxu0 0.0
    %820 = vmatprep.subr.mxu0 0.0
    %821 = vmatpush1.msra.mxu0 0.0
    %822 = vmatprep.subr.mxu0 0.0
    %823 = vmatpush1.msra.mxu0 0.0
    %824 = vmatprep.subr.mxu0 0.0
    %825 = vmatpush1.msra.mxu0 0.0
    %826 = vmatprep.subr.mxu0 0.0
    %827 = vmatpush1.msra.mxu0 0.0
    %828 = vmatprep.subr.mxu0 0.0
    %829 = vmatpush1.msra.mxu0 0.0
    %830 = vmatprep.subr.mxu0 0.0
    %831 = vmatpush1.msra.mxu0 0.0
    %832 = vmatprep.subr.mxu0 0.0
    %833 = vmatpush1.msra.mxu0 0.0
    %834 = vmatprep.subr.mxu0 0.0
    %835 = vmatpush1.msra.mxu0 0.0
    %836 = vmatprep.mubr.f32.mxu0 0.0
    %v837 = vand.u32 %v60, 4294901760
    %838 = vmatmul.mubr.f32.gmra.mrb[0].mxu0 %v837
    %v839 = vpop.f32.mrb[0].mxu0
    %v840 = vadd.f32 %v672, %v839
    %v841 = vpop.f32.mrb[0].mxu0
    %v842 = vadd.f32 %v674, %v841
    %843 = vdwg.mxu0
    %v844 = vand.u32 %v62, 4294901760
    %845 = vmatprep.subr.mxu0 %v844
    %v846 = vand.u32 %v61, 4294901760
    %847 = vmatpush1.msra.mxu0 %v846
    %v848 = vand.u32 %v64, 4294901760
    %849 = vmatprep.subr.mxu0 %v848
    %v850 = vand.u32 %v63, 4294901760
    %851 = vmatpush1.msra.mxu0 %v850
    %v852 = vand.u32 %v66, 4294901760
    %853 = vmatprep.subr.mxu0 %v852
    %v854 = vand.u32 %v65, 4294901760
    %855 = vmatpush1.msra.mxu0 %v854
    %v856 = vand.u32 %v68, 4294901760
    %857 = vmatprep.subr.mxu0 %v856
    %v858 = vand.u32 %v67, 4294901760
    %859 = vmatpush1.msra.mxu0 %v858
    %v860 = vand.u32 %v70, 4294901760
    %861 = vmatprep.subr.mxu0 %v860
    %v862 = vand.u32 %v69, 4294901760
    %863 = vmatpush1.msra.mxu0 %v862
    %v864 = vand.u32 %v72, 4294901760
    %865 = vmatprep.subr.mxu0 %v864
    %v866 = vand.u32 %v71, 4294901760
    %867 = vmatpush1.msra.mxu0 %v866
    %v868 = vand.u32 %v74, 4294901760
    %869 = vmatprep.subr.mxu0 %v868
    %v870 = vand.u32 %v73, 4294901760
    %871 = vmatpush1.msra.mxu0 %v870
    %v872 = vand.u32 %v76, 4294901760
    %873 = vmatprep.subr.mxu0 %v872
    %v874 = vand.u32 %v75, 4294901760
    %875 = vmatpush1.msra.mxu0 %v874
    %v876 = vand.u32 %v78, 4294901760
    %877 = vmatprep.subr.mxu0 %v876
    %v878 = vand.u32 %v77, 4294901760
    %879 = vmatpush1.msra.mxu0 %v878
    %v880 = vand.u32 %v80, 4294901760
    %881 = vmatprep.subr.mxu0 %v880
    %v882 = vand.u32 %v79, 4294901760
    %883 = vmatpush1.msra.mxu0 %v882
    %v884 = vand.u32 %v82, 4294901760
    %885 = vmatprep.subr.mxu0 %v884
    %v886 = vand.u32 %v81, 4294901760
    %887 = vmatpush1.msra.mxu0 %v886
    %v888 = vand.u32 %v84, 4294901760
    %889 = vmatprep.subr.mxu0 %v888
    %v890 = vand.u32 %v83, 4294901760
    %891 = vmatpush1.msra.mxu0 %v890
    %v892 = vand.u32 %v86, 4294901760
    %893 = vmatprep.subr.mxu0 %v892
    %v894 = vand.u32 %v85, 4294901760
    %895 = vmatpush1.msra.mxu0 %v894
    %v896 = vand.u32 %v88, 4294901760
    %897 = vmatprep.subr.mxu0 %v896
    %v898 = vand.u32 %v87, 4294901760
    %899 = vmatpush1.msra.mxu0 %v898
    %v900 = vand.u32 %v90, 4294901760
    %901 = vmatprep.subr.mxu0 %v900
    %v902 = vand.u32 %v89, 4294901760
    %903 = vmatpush1.msra.mxu0 %v902
    %v904 = vand.u32 %v92, 4294901760
    %905 = vmatprep.subr.mxu0 %v904
    %v906 = vand.u32 %v91, 4294901760
    %907 = vmatpush1.msra.mxu0 %v906
    %908 = vmatprep.subr.mxu0 0.0
    %909 = vmatpush1.msra.mxu0 0.0
    %910 = vmatprep.subr.mxu0 0.0
    %911 = vmatpush1.msra.mxu0 0.0
    %912 = vmatprep.subr.mxu0 0.0
    %913 = vmatpush1.msra.mxu0 0.0
    %914 = vmatprep.subr.mxu0 0.0
    %915 = vmatpush1.msra.mxu0 0.0
    %916 = vmatprep.subr.mxu0 0.0
    %917 = vmatpush1.msra.mxu0 0.0
    %918 = vmatprep.subr.mxu0 0.0
    %919 = vmatpush1.msra.mxu0 0.0
    %920 = vmatprep.subr.mxu0 0.0
    %921 = vmatpush1.msra.mxu0 0.0
    %922 = vmatprep.subr.mxu0 0.0
    %923 = vmatpush1.msra.mxu0 0.0
    %924 = vmatprep.subr.mxu0 0.0
    %925 = vmatpush1.msra.mxu0 0.0
    %926 = vmatprep.subr.mxu0 0.0
    %927 = vmatpush1.msra.mxu0 0.0
    %928 = vmatprep.subr.mxu0 0.0
    %929 = vmatpush1.msra.mxu0 0.0
    %930 = vmatprep.subr.mxu0 0.0
    %931 = vmatpush1.msra.mxu0 0.0
    %932 = vmatprep.subr.mxu0 0.0
    %933 = vmatpush1.msra.mxu0 0.0
    %934 = vmatprep.subr.mxu0 0.0
    %935 = vmatpush1.msra.mxu0 0.0
    %936 = vmatprep.subr.mxu0 0.0
    %937 = vmatpush1.msra.mxu0 0.0
    %938 = vmatprep.subr.mxu0 0.0
    %939 = vmatpush1.msra.mxu0 0.0
    %940 = vmatprep.mubr.f32.mxu0 0.0
    %v941 = vand.u32 %v60, 4294901760
    %942 = vmatmul.mubr.f32.gmra.mrb[0].mxu0 %v941
    %v943 = vpop.f32.mrb[0].mxu0
    %v944 = vadd.f32 %v840, %v943
    %v945 = vpop.f32.mrb[0].mxu0
    %v946 = vadd.f32 %v842, %v945
    %947 = vdwg.mxu0
    %949 = vset.pattern.permute.xlu0 0
    %950 = vperm.xlu0 %949, %v55
    %v951 = vpop.permute.xlu0 %950
    %v954 = vlaneseq
    %v955 = vshrl.u32 %v954, 7
    %v956 = vsub.s32 0, %v955
    %v957 = vrot.slane %v57, %v956
    %v958 = vlaneseq
    %v959 = vshrl.u32 %v958, 7
    %v960 = vsub.s32 1, %v959
    %v961 = vrot.slane %v57, %v960
    %v964 = vadd.f32 %v951, %v957
    %v965 = vadd.f32 %v951, %v961
    %v966 = vmul.f32 %v944, 2.0
    %v967 = vmul.f32 %v946, 2.0
    %v968 = vsub.f32 %v964, %v966
    %v969 = vsub.f32 %v965, %v967
    %v970 = vlaneseq
    %v971 = vshrl.u32 %v970, 7
    %v972 = vsub.s32 0, %v971
    %v973 = vrot.slane %v56, %v972
    %v974 = vlaneseq
    %v975 = vshrl.u32 %v974, 7
    %v976 = vsub.s32 1, %v975
    %v977 = vrot.slane %v56, %v976
    %978 = vset.pattern.permute.xlu0 0
    %979 = vperm.xlu0 %978, %v54
    %v980 = vpop.permute.xlu0 %979
    %vm981 = vcmp.eq.s32.totalorder %v973, %v980
    %vm982 = vcmp.eq.s32.totalorder %v977, %v980
    %vm983 = vcmp.ge.s32.totalorder %v56, 0
    %vm984 = vmxor %vm981, 1
    %vm985 = vmxor %vm982, 1
    %v986 = vsel %vm983, 1, 0
    %v987 = vlaneseq
    %v988 = vshrl.u32 %v987, 7
    %v989 = vsub.s32 0, %v988
    %v990 = vrot.slane %v986, %v989
    %v991 = vlaneseq
    %v992 = vshrl.u32 %v991, 7
    %v993 = vsub.s32 1, %v992
    %v994 = vrot.slane %v986, %v993
    %vm995 = vcmp.eq.s32.totalorder %v990, 1
    %vm996 = vcmp.eq.s32.totalorder %v994, 1
    %vm997 = vmand %vm995, %vm984
    %vm998 = vmand %vm996, %vm985
    %v999 = vld [vmem:[#allocation2] sm:$0xff]
    %v1000 = vsel %vm981, %v968, -inf
    %v1001 = vsel %vm982, %v969, -inf
    %v1002 = vmax.f32 %v1000, %v1001
    %1003 = vmax.xlane.f32.xlu0 %v1002
    %v1004 = vpop.xlane.xlu0 %1003
    %v1005 = vmax.f32 %v999, %v1004
    %vm1006 = vcmask 7168
    %1007 = vst.msk [vmem:[#allocation2] sm:$0xff] %vm1006, %v1005
    %v1008 = vld [vmem:[#allocation3] sm:$0xff]
    %v1009 = vsel %vm997, %v968, inf
    %v1010 = vsel %vm998, %v969, inf
    %v1011 = vmin.f32 %v1009, %v1010
    %1012 = vmin.xlane.f32.xlu0 %v1011
    %v1013 = vpop.xlane.xlu0 %1012
    %v1014 = vmin.f32 %v1008, %v1013
    %1015 = vst.msk [vmem:[#allocation3] sm:$0xff] %vm1006, %v1014
    %v1017 = vlaneseq
    %v1018 = vshrl.u32 %v1017, 7
    %v1019 = vsub.s32 0, %v1018
    %v1020 = vrot.slane %v59, %v1019
    %v1021 = vlaneseq
    %v1022 = vshrl.u32 %v1021, 7
    %v1023 = vsub.s32 1, %v1022
    %v1024 = vrot.slane %v59, %v1023
    %v1027 = vadd.f32 %v944, %v1020
    %v1028 = vadd.f32 %v946, %v1024
    %vm1029 = vcmp.ge.s32.totalorder %v58, 0
    %v1030 = vsel %vm1029, 1, 0
    %v1031 = vlaneseq
    %v1032 = vshrl.u32 %v1031, 7
    %v1033 = vsub.s32 0, %v1032
    %v1034 = vrot.slane %v1030, %v1033
    %v1035 = vlaneseq
    %v1036 = vshrl.u32 %v1035, 7
    %v1037 = vsub.s32 1, %v1036
    %v1038 = vrot.slane %v1030, %v1037
    %vm1039 = vcmp.eq.s32.totalorder %v1034, 1
    %vm1040 = vcmp.eq.s32.totalorder %v1038, 1
    %v1041 = vsel %vm1039, %v1027, -inf
    %v1042 = vsel %vm1040, %v1028, -inf
    %v1043 = vld [vmem:[#allocation4] sm:$0xff]
    %v1044 = vmax.f32 %v1041, %v1042
    %1045 = vmax.xlane.f32.xlu0 %v1044
    %v1046 = vpop.xlane.xlu0 %1045
    %v1047 = vmax.f32 %v1043, %v1046
    %v1048 = vld [vmem:[#allocation5] sm:$0xff]
    %v1049 = vsub.f32 %v1043, %v1047
    %v1050 = vmul.f32 %v1049, 1.442695
    %v1051 = vpow.pop %v1050
    %v1052 = vmul.f32 %v1048, %v1051
    %1054 = vset.pattern.permute.xlu0 0
    %1055 = vperm.xlu0 %1054, %v1047
    %v1056 = vpop.permute.xlu0 %1055
    %v1058 = vsub.f32 %v1041, %v1056
    %v1059 = vsub.f32 %v1042, %v1056
    %v1060 = vmul.f32 %v1058, 1.442695
    %v1061 = vpow.pop %v1060
    %v1062 = vmul.f32 %v1059, 1.442695
    %v1063 = vpow.pop %v1062
    %v1064 = vadd.f32 %v1061, %v1063
    %1065 = vadd.xlane.f32.xlu0 %v1064
    %v1066 = vpop.xlane.xlu0 %1065
    %v1067 = vadd.f32 %v1052, %v1066
    %1068 = vst.msk [vmem:[#allocation5] sm:$0xff] %vm1006, %v1067
    %1069 = vst.msk [vmem:[#allocation4] sm:$0xff] %vm1006, %v1047
    %v1070 = vld [vmem:[#allocation6] sm:$0xff]
    %v1071 = vlaneseq
    %v1072 = vshrl.u32 %v1071, 7
    %v1073 = vsub.s32 0, %v1072
    %v1074 = vrot.slane %v58, %v1073
    %v1075 = vlaneseq
    %v1076 = vshrl.u32 %v1075, 7
    %v1077 = vsub.s32 1, %v1076
    %v1078 = vrot.slane %v58, %v1077
    %vm1079 = vcmp.eq.s32.totalorder %v1074, %v980
    %vm1080 = vcmp.eq.s32.totalorder %v1078, %v980
    %v1081 = vsel %vm1079, %v1027, 0.0
    %v1082 = vsel %vm1080, %v1028, 0.0
    %v1083 = vadd.f32 %v1081, %v1082
    %1084 = vadd.xlane.f32.xlu0 %v1083
    %v1085 = vpop.xlane.xlu0 %1084
    %v1086 = vadd.f32 %v1070, %v1085
    %1087 = vst.msk [vmem:[#allocation6] sm:$0xff] %vm1006, %v1086
    // Predicated region
    $region42: #{tpu_custom_call.1} parent=1 // pred_check
      %p1088 = pneg %p44
    $region43: #{tpu_custom_call.1} parent=1 // pred_check_branch
      %1090 = sbr.rel (%p1088) target = $region45
    $region44: #{tpu_custom_call.1} parent=1 // pred_region
      %v1091 = vld [vmem:[#allocation2] sm:$0xff]
      %v1092 = vmax.f32 %v1091, 1e-12
      %v1093 = vrsqrt.pop %v1092
      %v1094 = vmul.f32 %v1092, %v1093
      %vm1095 = vcmp.eq.f32.partialorder %v1092, inf
      %v1096 = vsel %vm1095, %v1092, %v1094
      %vm1097 = vcmp.eq.f32.partialorder %v1092, 0.0
      %v1098 = vand.u32 %v1092, 2147483648
      %v1099 = vsel %vm1097, %v1098, %v1096
      %v1100 = vld [vmem:[#allocation3] sm:$0xff]
      %v1101 = vmax.f32 %v1100, 1e-12
      %v1102 = vrsqrt.pop %v1101
      %v1103 = vmul.f32 %v1101, %v1102
      %vm1104 = vcmp.eq.f32.partialorder %v1101, inf
      %v1105 = vsel %vm1104, %v1101, %v1103
      %vm1106 = vcmp.eq.f32.partialorder %v1101, 0.0
      %v1107 = vand.u32 %v1101, 2147483648
      %v1108 = vsel %vm1106, %v1107, %v1105
      %v1109 = vsub.f32 %v1099, %v1108
      %v1110 = vadd.f32 %v1109, 0.3
      %v1111 = vmax.f32 %v1110, 0.0
      %v1112 = vld [vmem:[#allocation4] sm:$0xff]
      %v1113 = vld [vmem:[#allocation5] sm:$0xff]
      %v1114 = vlog2.pop %v1113
      %v1115 = vmul.f32 %v1114, 0.6931472
      %v1116 = vadd.f32 %v1112, %v1115
      %v1117 = vld [vmem:[#allocation6] sm:$0xff]
      %v1118 = vsub.f32 %v1116, %v1117
      %vm1119 = vcmp.ge.s32.totalorder %v54, 0
      %v1120 = vadd.f32 %v1111, %v1118
      %v1121 = vsel %vm1119, %v1120, 0.0
      %v1122 = vsel %vm1006, %v1121, 0.0
      %1123 = vadd.xlane.f32.xlu0 %v1122
      %v1124 = vpop.xlane.xlu0 %1123
      %v1125 = vrot.slane %v1124, 4
      %v1126 = vadd.f32 %v1124, %v1125
      %v1127 = vrot.slane %v1126, 2
      %v1128 = vadd.f32 %v1126, %v1127
      %v1129 = vrot.slane %v1128, 1
      %v1130 = vadd.f32 %v1128, %v1129
      %s1131 = vtos %v1130
      %v1132 = vstv %s1131
      %vm1133 = vcmask 0
      %1134 = vst.msk [vmem:[#allocation10] sm:$0x1] %vm1133, %v1132
    $region45: #{tpu_custom_call.1} parent=1 // pred_fallthru
      _
    // Predicated region
    $region46: #{tpu_custom_call.1} parent=1 // pred_check
      _
    $region47: #{tpu_custom_call.1} parent=1 // pred_check_branch
      %1136 = sbr.rel (0) target = $region49
    $region48: #{tpu_custom_call.1} parent=1 // pred_region
      %s1138 = ssub.s32 16, 16
      %1139 = vsyncadd [#allocation9], %s1138
      %s1141 = sshll.u32 [#allocation10], 4
      %s1142 = int_to_ptr.vmem [resolvable:$true] %s1141
      %1144 = dma.vmem_to_hbm [thread:$0]  %s1142, 16, %s8, [#allocation9]
    $region49: #{tpu_custom_call.1} parent=1 // pred_fallthru
      _
    // Predicated region
    $region50: #{tpu_custom_call.1} parent=1 // pred_check
      _
    $region51: #{tpu_custom_call.1} parent=1 // pred_check_branch
      %1146 = sbr.rel (0) target = $region53
    $region52: #{tpu_custom_call.1} parent=1 // pred_region
      %1147 = dma.done [#allocation9], 16
    $region53: #{tpu_custom_call.1} parent=1 // pred_fallthru
      _
    %1148 = vsyncpa [#allocation8], 1
    %1149 = vsyncpa [#allocation9], 1

</llo_original>
